<compile_context>
chip_gen: v6e
topology: v6e:2x2x1
jax: 0.10.0
libtpu: 0.0.40
codegen_flags: <defaults>
</compile_context>

<pallas_src>
import jax
import jax.numpy as jnp
from jax.experimental import pallas as pl
from jax.experimental.pallas import tpu as pltpu

BN_EPS = 1e-5
FEAT = 512          # per-branch feature width (512 * 3 concat)
HIDDEN = 256
NUM_CLASSES = 40
OUT_PAD = 128       # lane-padded output width (40 -> 128) for unmasked stores


def _bn_relu_linear2(h, gamma_ref, beta_ref, w2_ref, b2_ref):
    """Train-mode BatchNorm1d (batch stats) -> ReLU -> lane-padded Linear2."""
    mean = jnp.mean(h, axis=0, keepdims=True)              # (1, 256)
    centered = h - mean
    var = jnp.mean(centered * centered, axis=0, keepdims=True)
    scale = gamma_ref[...] * jax.lax.rsqrt(var + BN_EPS)    # gamma folded in
    h = jnp.maximum(centered * scale + beta_ref[...], 0.0)  # BN + ReLU
    out = jnp.dot(h.astype(jnp.bfloat16), w2_ref[...],
                  preferred_element_type=jnp.float32)
    return out + b2_ref[...]


def fusion_kernel_single(pt_ref, mesh_ref, img_ref, w1_ref, gamma_ref,
                         beta_ref, w2_ref, b2_ref, o_ref):
    """grid=() variant (v6e / v7x): all three w1 K-slices in one step.

    pt/mesh/img: (B, 512) bf16   w1: (1536, 256) bf16
    gamma/beta:  (1, 256) f32    w2: (256, 128) bf16   b2: (1, 128) f32
    """
    F = pt_ref.shape[1]  # 512

    # Linear 1, with the concat fused as three partial dots on static w1
    # slices.  b1 omitted: it cancels exactly under train-mode BatchNorm.
    h = jnp.dot(pt_ref[...], w1_ref[0:F, :],
                preferred_element_type=jnp.float32)
    h += jnp.dot(mesh_ref[...], w1_ref[F:2 * F, :],
                 preferred_element_type=jnp.float32)
    h += jnp.dot(img_ref[...], w1_ref[2 * F:3 * F, :],
                 preferred_element_type=jnp.float32)

    o_ref[...] = _bn_relu_linear2(h, gamma_ref, beta_ref, w2_ref, b2_ref)


def fusion_kernel_pipelined(x_ref, w1_ref, gamma_ref, beta_ref, w2_ref,
                            b2_ref, o_ref, acc_ref):
    """grid=(3,) variant (v5e): stream w1 K-slices, overlap DMA with the MXU.

    x: (B, 512) bf16 (leading (3,) grid axis squeezed)   w1 slice: (512, 256)
    acc_ref: (B, 256) f32 VMEM scratch accumulator.
    """
    k = pl.program_id(0)

    @pl.when(k == 0)
    def _():
        acc_ref[...] = jnp.zeros_like(acc_ref)

    acc_ref[...] += jnp.dot(x_ref[...], w1_ref[...],
                            preferred_element_type=jnp.float32)

    @pl.when(k == pl.num_programs(0) - 1)
    def _():
        o_ref[...] = _bn_relu_linear2(acc_ref[...], gamma_ref, beta_ref,
                                      w2_ref, b2_ref)


def pack_params(params, out_pad=OUT_PAD):
    """One-time packing of the PyTorch-style params for the kernel."""
    w1, b1, gamma, beta, w2, b2 = params
    del b1  # exact no-op under train-mode BatchNorm (mean subtraction)
    hidden, nc = w2.shape
    w2p = jnp.zeros((hidden, out_pad), jnp.bfloat16).at[:, :nc].set(
        w2.astype(jnp.bfloat16))
    b2p = jnp.zeros((1, out_pad), jnp.float32).at[:, :nc].set(b2)
    return dict(w1=w1.astype(jnp.bfloat16), gamma=gamma, beta=beta,
                w2=w2p, b2=b2p, num_classes=nc)


def _is_v5e():
    try:
        kind = jax.devices()[0].device_kind.lower()
    except Exception:
        return False
    return ("v5e" in kind) or ("v5 lite" in kind) or ("v5lite" in kind)


def _cost_estimate(B, w1, w2p, gamma, beta, b2p):
    return pl.CostEstimate(
        flops=2 * B * w1.shape[0] * w1.shape[1]
              + 2 * B * w2p.shape[0] * w2p.shape[1],
        transcendentals=w1.shape[1],  # rsqrt row
        bytes_accessed=3 * B * FEAT * 2            # bf16 inputs
                       + w1.size * 2 + w2p.size * 2
                       + (gamma.size + beta.size + b2p.size) * 4
                       + B * w2p.shape[1] * 4,
    )


def fusion_net(pt_base, mesh_base, img_base, packed, *, pipeline_k=None,
               slice_output=True):
    """Fused forward pass: one pallas_call, concat folded into the kernel."""
    w1, gamma, beta, w2p, b2p = (packed["w1"], packed["gamma"], packed["beta"],
                                 packed["w2"], packed["b2"])
    B = pt_base.shape[0]
    # Keep B a multiple of the 8-row f32 sublane tile (perf-review item); a
    # smaller/ragged batch would need masked BN statistics, not zero padding.
    assert B >= 8 and B % 8 == 0, "batch must be a multiple of 8"

    # Upstream backbones should emit bf16 already; these are no-op casts then.
    pt = pt_base.astype(jnp.bfloat16)
    mesh = mesh_base.astype(jnp.bfloat16)
    img = img_base.astype(jnp.bfloat16)

    if pipeline_k is None:
        pipeline_k = _is_v5e()

    cost = _cost_estimate(B, w1, w2p, gamma, beta, b2p)

    if pipeline_k:
        # v5e path: stream the three 512-row K-slices of w1; Pallas
        # double-buffers slice k+1's DMA behind slice k's MXU work.
        x = jnp.stack([pt, mesh, img], axis=0)  # (3, B, 512) bf16
        out = pl.pallas_call(
            fusion_kernel_pipelined,
            out_shape=jax.ShapeDtypeStruct((B, OUT_PAD), jnp.float32),
            grid=(3,),
            in_specs=[
                pl.BlockSpec((None, B, FEAT), lambda k: (k, 0, 0)),
                pl.BlockSpec((FEAT, HIDDEN), lambda k: (k, 0)),
                pl.BlockSpec(gamma.shape, lambda k: (0, 0)),
                pl.BlockSpec(beta.shape, lambda k: (0, 0)),
                pl.BlockSpec(w2p.shape, lambda k: (0, 0)),
                pl.BlockSpec(b2p.shape, lambda k: (0, 0)),
            ],
            out_specs=pl.BlockSpec((B, OUT_PAD), lambda k: (0, 0)),
            scratch_shapes=[pltpu.VMEM((B, HIDDEN), jnp.float32)],
            compiler_params=pltpu.CompilerParams(
                dimension_semantics=("arbitrary",)),
            cost_estimate=cost,
        )(x, w1, gamma, beta, w2p, b2p)
    else:
        # v6e / v7x path: single step, three separate inputs (no concat op).
        out = pl.pallas_call(
            fusion_kernel_single,
            out_shape=jax.ShapeDtypeStruct((B, OUT_PAD), jnp.float32),
            in_specs=[
                pl.BlockSpec(pt.shape, lambda: (0, 0)),
                pl.BlockSpec(mesh.shape, lambda: (0, 0)),
                pl.BlockSpec(img.shape, lambda: (0, 0)),
                pl.BlockSpec(w1.shape, lambda: (0, 0)),
                pl.BlockSpec(gamma.shape, lambda: (0, 0)),
                pl.BlockSpec(beta.shape, lambda: (0, 0)),
                pl.BlockSpec(w2p.shape, lambda: (0, 0)),
                pl.BlockSpec(b2p.shape, lambda: (0, 0)),
            ],
            out_specs=pl.BlockSpec((B, OUT_PAD), lambda: (0, 0)),
            cost_estimate=cost,
        )(pt, mesh, img, w1, gamma, beta, w2p, b2p)

    if slice_output:
        # Downstream consumers that tolerate 128 padded lanes can pass
        # slice_output=False and skip this extra op (perf-review item).
        out = out[:, :packed["num_classes"]]
    return out


def init_params(key, in_dim=FEAT * 3, hidden=HIDDEN, num_classes=NUM_CLASSES):
    """PyTorch-style parameter set (Linear default init, fresh BatchNorm1d)."""
    k1, k2, k3, k4 = jax.random.split(key, 4)
    lim1 = 1.0 / jnp.sqrt(jnp.float32(in_dim))
    lim2 = 1.0 / jnp.sqrt(jnp.float32(hidden))
    w1 = jax.random.uniform(k1, (in_dim, hidden), jnp.float32, -lim1, lim1)
    b1 = jax.random.uniform(k2, (1, hidden), jnp.float32, -lim1, lim1)
    gamma = jnp.ones((1, hidden), jnp.float32)
    beta = jnp.zeros((1, hidden), jnp.float32)
    w2 = jax.random.uniform(k3, (hidden, num_classes), jnp.float32, -lim2, lim2)
    b2 = jax.random.uniform(k4, (1, num_classes), jnp.float32, -lim2, lim2)
    return (w1, b1, gamma, beta, w2, b2)


def reference(pt_base, mesh_base, img_base, params):
    """Pure-JAX reference with the same bf16 weight/activation quantization."""
    w1, b1, gamma, beta, w2, b2 = params
    hi = jax.lax.Precision.HIGHEST

    x = jnp.concatenate([pt_base, mesh_base, img_base],
                        axis=1).astype(jnp.float32)       # inputs already bf16
    w1q = w1.astype(jnp.bfloat16).astype(jnp.float32)
    h = jnp.dot(x, w1q, precision=hi) + b1                 # b1 cancels under BN

    mean = jnp.mean(h, axis=0, keepdims=True)
    var = jnp.mean((h - mean) ** 2, axis=0, keepdims=True)
    h = (h - mean) / jnp.sqrt(var + BN_EPS)
    h = h * gamma + beta
    h = jnp.maximum(h, 0.0)

    hq = h.astype(jnp.bfloat16).astype(jnp.float32)
    w2q = w2.astype(jnp.bfloat16).astype(jnp.float32)
    return jnp.dot(hq, w2q, precision=hi) + b2


if __name__ == "__main__":
    key = jax.random.PRNGKey(0)
    kp, km, ki, kw = jax.random.split(key, 4)

    B = 8  # multiple of the 8-row sublane tile
    # Backbone features arrive in bf16 (perf-review item: halves input DMA).
    pt_base = jax.random.normal(kp, (B, FEAT), jnp.float32).astype(jnp.bfloat16)
    mesh_base = jax.random.normal(km, (B, FEAT), jnp.float32).astype(jnp.bfloat16)
    img_base = jax.random.normal(ki, (B, FEAT), jnp.float32).astype(jnp.bfloat16)

    params = init_params(kw)
    packed = pack_params(params)
    ref = reference(pt_base, mesh_base, img_base, params)

    # Single-shot variant (default on v6e / v7x).
    out_single = fusion_net(pt_base, mesh_base, img_base, packed,
                            pipeline_k=False)
    out_single = jax.block_until_ready(out_single)
    assert out_single.shape == (B, NUM_CLASSES), out_single.shape
    assert jnp.allclose(out_single, ref, atol=1e-3, rtol=1e-3), \
        "single-shot kernel mismatch vs reference"

    # K-pipelined variant (default on v5e: hides the w1 HBM fetch behind MXU).
    out_pipe = fusion_net(pt_base, mesh_base, img_base, packed,
                          pipeline_k=True)
    out_pipe = jax.block_until_ready(out_pipe)
    assert out_pipe.shape == (B, NUM_CLASSES), out_pipe.shape
    assert jnp.allclose(out_pipe, ref, atol=1e-3, rtol=1e-3), \
        "K-pipelined kernel mismatch vs reference"

    # Auto (device_kind-based) selection also runs cleanly.
    out_auto = jax.block_until_ready(
        fusion_net(pt_base, mesh_base, img_base, packed))
    assert jnp.allclose(out_auto, ref, atol=1e-3, rtol=1e-3), \
        "auto-selected kernel mismatch vs reference"

    print("KERNEL_OK")
</pallas_src>

<mosaic_0001>
module attributes {stable_mosaic.version = 11 : i64} {
  func.func @fusion_kernel_single(%arg0: memref<8x512xbf16, #tpu.memory_space<vmem>>, %arg1: memref<8x512xbf16, #tpu.memory_space<vmem>>, %arg2: memref<8x512xbf16, #tpu.memory_space<vmem>>, %arg3: memref<1536x256xbf16, #tpu.memory_space<vmem>>, %arg4: memref<1x256xf32, #tpu.memory_space<vmem>>, %arg5: memref<1x256xf32, #tpu.memory_space<vmem>>, %arg6: memref<256x128xbf16, #tpu.memory_space<vmem>>, %arg7: memref<1x128xf32, #tpu.memory_space<vmem>>, %arg8: memref<8x128xf32, #tpu.memory_space<vmem>>) attributes {dimension_semantics = [], scalar_prefetch = 0 : i64, scratch_operands = 0 : i64, tpu.core_type = #tpu.core_type<tc>} {
    %c0 = arith.constant 0 : index
    %c0_0 = arith.constant 0 : index
    %0 = vector.load %arg0[%c0, %c0_0] : memref<8x512xbf16, #tpu.memory_space<vmem>>, vector<8x512xbf16>
    %c0_1 = arith.constant 0 : index
    %c0_2 = arith.constant 0 : index
    %1 = vector.load %arg3[%c0_1, %c0_2] : memref<1536x256xbf16, #tpu.memory_space<vmem>>, vector<512x256xbf16>
    %cst = arith.constant dense<0.000000e+00> : vector<8x256xf32>
    %2 = tpu.matmul %0, %1, %cst {dimension_numbers = #tpu.dot_dimension_numbers<[1], [0], [0], [1], [0, 0, 1, 1], [], []>} : vector<8x512xbf16>, vector<512x256xbf16>, vector<8x256xf32> -> vector<8x256xf32>
    %c0_3 = arith.constant 0 : index
    %c0_4 = arith.constant 0 : index
    %3 = vector.load %arg1[%c0_3, %c0_4] : memref<8x512xbf16, #tpu.memory_space<vmem>>, vector<8x512xbf16>
    %c512 = arith.constant 512 : index
    %c0_5 = arith.constant 0 : index
    %4 = vector.load %arg3[%c512, %c0_5] : memref<1536x256xbf16, #tpu.memory_space<vmem>>, vector<512x256xbf16>
    %cst_6 = arith.constant dense<0.000000e+00> : vector<8x256xf32>
    %5 = tpu.matmul %3, %4, %cst_6 {dimension_numbers = #tpu.dot_dimension_numbers<[1], [0], [0], [1], [0, 0, 1, 1], [], []>} : vector<8x512xbf16>, vector<512x256xbf16>, vector<8x256xf32> -> vector<8x256xf32>
    %6 = arith.addf %2, %5 : vector<8x256xf32>
    %c0_7 = arith.constant 0 : index
    %c0_8 = arith.constant 0 : index
    %7 = vector.load %arg2[%c0_7, %c0_8] : memref<8x512xbf16, #tpu.memory_space<vmem>>, vector<8x512xbf16>
    %c1024 = arith.constant 1024 : index
    %c0_9 = arith.constant 0 : index
    %8 = vector.load %arg3[%c1024, %c0_9] : memref<1536x256xbf16, #tpu.memory_space<vmem>>, vector<512x256xbf16>
    %cst_10 = arith.constant dense<0.000000e+00> : vector<8x256xf32>
    %9 = tpu.matmul %7, %8, %cst_10 {dimension_numbers = #tpu.dot_dimension_numbers<[1], [0], [0], [1], [0, 0, 1, 1], [], []>} : vector<8x512xbf16>, vector<512x256xbf16>, vector<8x256xf32> -> vector<8x256xf32>
    %10 = arith.addf %6, %9 : vector<8x256xf32>
    %cst_11 = arith.constant dense<0.000000e+00> : vector<256xf32>
    %11 = vector.multi_reduction <add>, %10, %cst_11 [0] : vector<8x256xf32> to vector<256xf32>
    %12 = vector.shape_cast %11 : vector<256xf32> to vector<1x256xf32>
    %cst_12 = arith.constant 8.000000e+00 : f32
    %13 = vector.broadcast %cst_12 : f32 to vector<1x256xf32>
    %14 = arith.divf %12, %13 : vector<1x256xf32>
    %15 = vector.broadcast %14 : vector<1x256xf32> to vector<8x256xf32>
    %16 = arith.subf %10, %15 : vector<8x256xf32>
    %17 = arith.mulf %16, %16 : vector<8x256xf32>
    %cst_13 = arith.constant dense<0.000000e+00> : vector<256xf32>
    %18 = vector.multi_reduction <add>, %17, %cst_13 [0] : vector<8x256xf32> to vector<256xf32>
    %19 = vector.shape_cast %18 : vector<256xf32> to vector<1x256xf32>
    %cst_14 = arith.constant 8.000000e+00 : f32
    %20 = vector.broadcast %cst_14 : f32 to vector<1x256xf32>
    %21 = arith.divf %19, %20 : vector<1x256xf32>
    %c0_15 = arith.constant 0 : index
    %c0_16 = arith.constant 0 : index
    %22 = vector.load %arg4[%c0_15, %c0_16] : memref<1x256xf32, #tpu.memory_space<vmem>>, vector<1x256xf32>
    %cst_17 = arith.constant 9.99999974E-6 : f32
    %23 = vector.broadcast %cst_17 : f32 to vector<1x256xf32>
    %24 = arith.addf %21, %23 : vector<1x256xf32>
    %25 = math.rsqrt %24 : vector<1x256xf32>
    %26 = arith.mulf %22, %25 : vector<1x256xf32>
    %27 = vector.broadcast %26 : vector<1x256xf32> to vector<8x256xf32>
    %28 = arith.mulf %16, %27 : vector<8x256xf32>
    %c0_18 = arith.constant 0 : index
    %c0_19 = arith.constant 0 : index
    %29 = vector.load %arg5[%c0_18, %c0_19] : memref<1x256xf32, #tpu.memory_space<vmem>>, vector<1x256xf32>
    %30 = vector.broadcast %29 : vector<1x256xf32> to vector<8x256xf32>
    %31 = arith.addf %28, %30 : vector<8x256xf32>
    %cst_20 = arith.constant 0.000000e+00 : f32
    %32 = vector.broadcast %cst_20 : f32 to vector<8x256xf32>
    %33 = arith.maximumf %31, %32 : vector<8x256xf32>
    %34 = arith.truncf %33 : vector<8x256xf32> to vector<8x256xbf16>
    %c0_21 = arith.constant 0 : index
    %c0_22 = arith.constant 0 : index
    %35 = vector.load %arg6[%c0_21, %c0_22] : memref<256x128xbf16, #tpu.memory_space<vmem>>, vector<256x128xbf16>
    %cst_23 = arith.constant dense<0.000000e+00> : vector<8x128xf32>
    %36 = tpu.matmul %34, %35, %cst_23 {dimension_numbers = #tpu.dot_dimension_numbers<[1], [0], [0], [1], [0, 0, 1, 1], [], []>} : vector<8x256xbf16>, vector<256x128xbf16>, vector<8x128xf32> -> vector<8x128xf32>
    %c0_24 = arith.constant 0 : index
    %c0_25 = arith.constant 0 : index
    %37 = vector.load %arg7[%c0_24, %c0_25] : memref<1x128xf32, #tpu.memory_space<vmem>>, vector<1x128xf32>
    %38 = vector.broadcast %37 : vector<1x128xf32> to vector<8x128xf32>
    %39 = arith.addf %36, %38 : vector<8x128xf32>
    %c0_26 = arith.constant 0 : index
    %c0_27 = arith.constant 0 : index
    %40 = vector.load %arg8[%c0_26, %c0_27] : memref<8x128xf32, #tpu.memory_space<vmem>>, vector<8x128xf32>
    tpu.vector_store %arg8[%c0_26, %c0_27], %39 {strides = array<i32>} : memref<8x128xf32, #tpu.memory_space<vmem>>, vector<8x128xf32>,
    return
  }
}

</mosaic_0001>

<llo_original>
// kernel: tpu_custom_call.1
$region0: #{tpu_custom_call.1}
  #allocation0 [shape = 'u32[]', space=smem, size = 0x4, offset = 0x4, fixed_abs, tag = 'smem constant byte address 0x4 - core index']
  #allocation1 [shape = 'u32[144,128]{1,0:T(1,128)}', space=vmem, size = 0x12000, scoped, tag = 'internal scratch']
  %s0 = inlined_call_operand.hbm [shape: bf16[8,512], index: 0, kind: input, shape index: {}]
  %s1 = inlined_call_operand.hbm [shape: bf16[8,512], index: 1, kind: input, shape index: {}]
  %s2 = inlined_call_operand.hbm [shape: bf16[8,512], index: 2, kind: input, shape index: {}]
  %s3 = inlined_call_operand.hbm [shape: bf16[1536,256], index: 3, kind: input, shape index: {}]
  %s4 = inlined_call_operand.vmem [shape: f32[1,256], index: 4, kind: input, shape index: {}]
  %s5 = inlined_call_operand.vmem [shape: f32[1,256], index: 5, kind: input, shape index: {}]
  %s6 = inlined_call_operand.hbm [shape: bf16[256,128], index: 6, kind: input, shape index: {}]
  %s7 = inlined_call_operand.vmem [shape: f32[1,128], index: 7, kind: input, shape index: {}]
  %s8 = inlined_call_operand.hbm [shape: f32[8,128], index: 8, kind: output, shape index: {}]
  %s9 = sld [smem:[#allocation0]]
  $region62: #{tpu_custom_call.1} parent=0
    _
  %s11 = ssub.s32 1, %s9
  %s12 = scalar_select 0, %s11, %s9
  $region1: #{tpu_custom_call.1} parent=0
    #allocation2 [shape = 'u8[8192]{0}', space=vmem, size = 0x2000, scoped, tag = 'input window, operand 0, single buffered']
    #allocation3 [shape = 's32[1]{0}', space=sflag, size = 0x4, scoped, tag = 'scoped memory for tpu_custom_call.1']
    #allocation4 [shape = 's32[1]{0}', space=sflag, size = 0x4, scoped, tag = 'scoped memory for tpu_custom_call.1']
    #allocation5 [shape = 'u8[8192]{0}', space=vmem, size = 0x2000, scoped, tag = 'input window, operand 1, single buffered']
    #allocation6 [shape = 's32[1]{0}', space=sflag, size = 0x4, scoped, tag = 'scoped memory for tpu_custom_call.1']
    #allocation7 [shape = 'u8[8192]{0}', space=vmem, size = 0x2000, scoped, tag = 'input window, operand 2, single buffered']
    #allocation8 [shape = 'u8[786432]{0}', space=vmem, size = 0xc0000, scoped, tag = 'input window, operand 3, single buffered']
    #allocation9 [shape = 's32[1]{0}', space=sflag, size = 0x4, scoped, tag = 'scoped memory for tpu_custom_call.1']
    #allocation10 [shape = 'u8[65536]{0}', space=vmem, size = 0x10000, scoped, tag = 'input window, operand 6, single buffered']
    #allocation11 [shape = 'u8[4096]{0}', space=vmem, size = 0x1000, scoped, tag = 'output window, operand 0, single buffered']
    %13 = vsyncpa [#allocation3], 0
    %14 = vsyncpa [#allocation6], 0
    %15 = vsyncpa [#allocation9], 0
    %16 = vsyncpa [#allocation4], 0
    // Predicated region
    $region2: #{tpu_custom_call.1} parent=1 // pred_check
      _
    $region3: #{tpu_custom_call.1} parent=1 // pred_check_branch
      %18 = sbr.rel (0) target = $region5
    $region4: #{tpu_custom_call.1} parent=1 // pred_region
      %s20 = ssub.s32 256, 256
      %21 = vsyncadd [#allocation3], %s20
      %s23 = sshll.u32 [#allocation2], 4
      %s24 = int_to_ptr.vmem [resolvable:$true] %s23
      %26 = dma.hbm_to_vmem [thread:$0]  %s0, 256, %s24, [#allocation3]
    $region5: #{tpu_custom_call.1} parent=1 // pred_fallthru
      _
    // Predicated region
    $region6: #{tpu_custom_call.1} parent=1 // pred_check
      _
    $region7: #{tpu_custom_call.1} parent=1 // pred_check_branch
      %28 = sbr.rel (0) target = $region9
    $region8: #{tpu_custom_call.1} parent=1 // pred_region
      %s30 = ssub.s32 256, 256
      %31 = vsyncadd [#allocation6], %s30
      %s33 = sshll.u32 [#allocation5], 4
      %s34 = int_to_ptr.vmem [resolvable:$true] %s33
      %36 = dma.hbm_to_vmem [thread:$0]  %s1, 256, %s34, [#allocation6]
    $region9: #{tpu_custom_call.1} parent=1 // pred_fallthru
      _
    // Predicated region
    $region10: #{tpu_custom_call.1} parent=1 // pred_check
      _
    $region11: #{tpu_custom_call.1} parent=1 // pred_check_branch
      %38 = sbr.rel (0) target = $region13
    $region12: #{tpu_custom_call.1} parent=1 // pred_region
      %s40 = ssub.s32 256, 256
      %41 = vsyncadd [#allocation6], %s40
      %s43 = sshll.u32 [#allocation7], 4
      %s44 = int_to_ptr.vmem [resolvable:$true] %s43
      %46 = dma.hbm_to_vmem [thread:$0]  %s2, 256, %s44, [#allocation6]
    $region13: #{tpu_custom_call.1} parent=1 // pred_fallthru
      _
    // Predicated region
    $region14: #{tpu_custom_call.1} parent=1 // pred_check
      _
    $region15: #{tpu_custom_call.1} parent=1 // pred_check_branch
      %48 = sbr.rel (0) target = $region17
    $region16: #{tpu_custom_call.1} parent=1 // pred_region
      %s50 = ssub.s32 24576, 24576
      %51 = vsyncadd [#allocation9], %s50
      %s52 = sshll.u32 [#allocation8], 4
      %s53 = int_to_ptr.vmem [resolvable:$true] %s52
      %58 = dma.hbm_to_vmem [thread:$0]  %s3, 24576, %s53, [#allocation9], 128, 128, 8
    $region17: #{tpu_custom_call.1} parent=1 // pred_fallthru
      _
    // Predicated region
    $region18: #{tpu_custom_call.1} parent=1 // pred_check
      _
    $region19: #{tpu_custom_call.1} parent=1 // pred_check_branch
      %60 = sbr.rel (0) target = $region21
    $region20: #{tpu_custom_call.1} parent=1 // pred_region
      _
    $region21: #{tpu_custom_call.1} parent=1 // pred_fallthru
      _
    // Predicated region
    $region22: #{tpu_custom_call.1} parent=1 // pred_check
      _
    $region23: #{tpu_custom_call.1} parent=1 // pred_check_branch
      %62 = sbr.rel (0) target = $region25
    $region24: #{tpu_custom_call.1} parent=1 // pred_region
      _
    $region25: #{tpu_custom_call.1} parent=1 // pred_fallthru
      _
    // Predicated region
    $region26: #{tpu_custom_call.1} parent=1 // pred_check
      _
    $region27: #{tpu_custom_call.1} parent=1 // pred_check_branch
      %64 = sbr.rel (0) target = $region29
    $region28: #{tpu_custom_call.1} parent=1 // pred_region
      %s66 = ssub.s32 2048, 2048
      %67 = vsyncadd [#allocation9], %s66
      %s68 = sshll.u32 [#allocation10], 4
      %s69 = int_to_ptr.vmem [resolvable:$true] %s68
      %74 = dma.hbm_to_vmem [thread:$0]  %s6, 2048, %s69, [#allocation9], 64, 64, 4
    $region29: #{tpu_custom_call.1} parent=1 // pred_fallthru
      _
    // Predicated region
    $region30: #{tpu_custom_call.1} parent=1 // pred_check
      _
    $region31: #{tpu_custom_call.1} parent=1 // pred_check_branch
      %76 = sbr.rel (0) target = $region33
    $region32: #{tpu_custom_call.1} parent=1 // pred_region
      _
    $region33: #{tpu_custom_call.1} parent=1 // pred_fallthru
      _
    // Predicated region
    $region34: #{tpu_custom_call.1} parent=1 // pred_check
      _
    $region35: #{tpu_custom_call.1} parent=1 // pred_check_branch
      %78 = sbr.rel (0) target = $region37
    $region36: #{tpu_custom_call.1} parent=1 // pred_region
      %79 = dma.done [#allocation3], 256
    $region37: #{tpu_custom_call.1} parent=1 // pred_fallthru
      _
    // Predicated region
    $region38: #{tpu_custom_call.1} parent=1 // pred_check
      _
    $region39: #{tpu_custom_call.1} parent=1 // pred_check_branch
      %81 = sbr.rel (0) target = $region41
    $region40: #{tpu_custom_call.1} parent=1 // pred_region
      %82 = dma.done [#allocation6], 256
    $region41: #{tpu_custom_call.1} parent=1 // pred_fallthru
      _
    // Predicated region
    $region42: #{tpu_custom_call.1} parent=1 // pred_check
      _
    $region43: #{tpu_custom_call.1} parent=1 // pred_check_branch
      %84 = sbr.rel (0) target = $region45
    $region44: #{tpu_custom_call.1} parent=1 // pred_region
      %85 = dma.done [#allocation6], 256
    $region45: #{tpu_custom_call.1} parent=1 // pred_fallthru
      _
    // Predicated region
    $region46: #{tpu_custom_call.1} parent=1 // pred_check
      _
    $region47: #{tpu_custom_call.1} parent=1 // pred_check_branch
      %87 = sbr.rel (0) target = $region49
    $region48: #{tpu_custom_call.1} parent=1 // pred_region
      %88 = dma.done [#allocation9], 24576
    $region49: #{tpu_custom_call.1} parent=1 // pred_fallthru
      _
    // Predicated region
    $region50: #{tpu_custom_call.1} parent=1 // pred_check
      _
    $region51: #{tpu_custom_call.1} parent=1 // pred_check_branch
      %90 = sbr.rel (0) target = $region53
    $region52: #{tpu_custom_call.1} parent=1 // pred_region
      %91 = dma.done [#allocation9], 2048
    $region53: #{tpu_custom_call.1} parent=1 // pred_fallthru
      _
    %v93 = vld [vmem:[#allocation2] sm:$0xff]
    %v94 = vld [vmem:[#allocation2 + $0x8] sm:$0xff]
    %v95 = vld [vmem:[#allocation8] sm:$0xff]
    %v96 = vld [vmem:[#allocation8 + $0x8] sm:$0xff]
    %v97 = vld [vmem:[#allocation8 + $0x10] sm:$0xff]
    %v98 = vld [vmem:[#allocation8 + $0x18] sm:$0xff]
    %v99 = vld [vmem:[#allocation8 + $0x20] sm:$0xff]
    %v100 = vld [vmem:[#allocation8 + $0x28] sm:$0xff]
    %v101 = vld [vmem:[#allocation8 + $0x30] sm:$0xff]
    %v102 = vld [vmem:[#allocation8 + $0x38] sm:$0xff]
    %v103 = vld [vmem:[#allocation8 + $0x40] sm:$0xff]
    %v104 = vld [vmem:[#allocation8 + $0x48] sm:$0xff]
    %v105 = vld [vmem:[#allocation8 + $0x50] sm:$0xff]
    %v106 = vld [vmem:[#allocation8 + $0x58] sm:$0xff]
    %v107 = vld [vmem:[#allocation8 + $0x60] sm:$0xff]
    %v108 = vld [vmem:[#allocation8 + $0x68] sm:$0xff]
    %v109 = vld [vmem:[#allocation8 + $0x70] sm:$0xff]
    %v110 = vld [vmem:[#allocation8 + $0x78] sm:$0xff]
    %v111 = vld [vmem:[#allocation8 + $0x80] sm:$0xff]
    %v112 = vld [vmem:[#allocation8 + $0x88] sm:$0xff]
    %v113 = vld [vmem:[#allocation8 + $0x90] sm:$0xff]
    %v114 = vld [vmem:[#allocation8 + $0x98] sm:$0xff]
    %v115 = vld [vmem:[#allocation8 + $0xa0] sm:$0xff]
    %v116 = vld [vmem:[#allocation8 + $0xa8] sm:$0xff]
    %v117 = vld [vmem:[#allocation8 + $0xb0] sm:$0xff]
    %v118 = vld [vmem:[#allocation8 + $0xb8] sm:$0xff]
    %v119 = vld [vmem:[#allocation8 + $0xc0] sm:$0xff]
    %v120 = vld [vmem:[#allocation8 + $0xc8] sm:$0xff]
    %v121 = vld [vmem:[#allocation8 + $0xd0] sm:$0xff]
    %v122 = vld [vmem:[#allocation8 + $0xd8] sm:$0xff]
    %v123 = vld [vmem:[#allocation8 + $0xe0] sm:$0xff]
    %v124 = vld [vmem:[#allocation8 + $0xe8] sm:$0xff]
    %v125 = vld [vmem:[#allocation8 + $0xf0] sm:$0xff]
    %v126 = vld [vmem:[#allocation8 + $0xf8] sm:$0xff]
    %v127 = vld [vmem:[#allocation8 + $0x100] sm:$0xff]
    %v128 = vld [vmem:[#allocation8 + $0x108] sm:$0xff]
    %v129 = vld [vmem:[#allocation8 + $0x110] sm:$0xff]
    %v130 = vld [vmem:[#allocation8 + $0x118] sm:$0xff]
    %v131 = vld [vmem:[#allocation8 + $0x120] sm:$0xff]
    %v132 = vld [vmem:[#allocation8 + $0x128] sm:$0xff]
    %v133 = vld [vmem:[#allocation8 + $0x130] sm:$0xff]
    %v134 = vld [vmem:[#allocation8 + $0x138] sm:$0xff]
    %v135 = vld [vmem:[#allocation8 + $0x140] sm:$0xff]
    %v136 = vld [vmem:[#allocation8 + $0x148] sm:$0xff]
    %v137 = vld [vmem:[#allocation8 + $0x150] sm:$0xff]
    %v138 = vld [vmem:[#allocation8 + $0x158] sm:$0xff]
    %v139 = vld [vmem:[#allocation8 + $0x160] sm:$0xff]
    %v140 = vld [vmem:[#allocation8 + $0x168] sm:$0xff]
    %v141 = vld [vmem:[#allocation8 + $0x170] sm:$0xff]
    %v142 = vld [vmem:[#allocation8 + $0x178] sm:$0xff]
    %v143 = vld [vmem:[#allocation8 + $0x180] sm:$0xff]
    %v144 = vld [vmem:[#allocation8 + $0x188] sm:$0xff]
    %v145 = vld [vmem:[#allocation8 + $0x190] sm:$0xff]
    %v146 = vld [vmem:[#allocation8 + $0x198] sm:$0xff]
    %v147 = vld [vmem:[#allocation8 + $0x1a0] sm:$0xff]
    %v148 = vld [vmem:[#allocation8 + $0x1a8] sm:$0xff]
    %v149 = vld [vmem:[#allocation8 + $0x1b0] sm:$0xff]
    %v150 = vld [vmem:[#allocation8 + $0x1b8] sm:$0xff]
    %v151 = vld [vmem:[#allocation8 + $0x1c0] sm:$0xff]
    %v152 = vld [vmem:[#allocation8 + $0x1c8] sm:$0xff]
    %v153 = vld [vmem:[#allocation8 + $0x1d0] sm:$0xff]
    %v154 = vld [vmem:[#allocation8 + $0x1d8] sm:$0xff]
    %v155 = vld [vmem:[#allocation8 + $0x1e0] sm:$0xff]
    %v156 = vld [vmem:[#allocation8 + $0x1e8] sm:$0xff]
    %v157 = vld [vmem:[#allocation8 + $0x1f0] sm:$0xff]
    %v158 = vld [vmem:[#allocation8 + $0x1f8] sm:$0xff]
    %v159 = vld [vmem:[#allocation5] sm:$0xff]
    %v160 = vld [vmem:[#allocation5 + $0x8] sm:$0xff]
    %v161 = vld [vmem:[#allocation8 + $0x200] sm:$0xff]
    %v162 = vld [vmem:[#allocation8 + $0x208] sm:$0xff]
    %v163 = vld [vmem:[#allocation8 + $0x210] sm:$0xff]
    %v164 = vld [vmem:[#allocation8 + $0x218] sm:$0xff]
    %v165 = vld [vmem:[#allocation8 + $0x220] sm:$0xff]
    %v166 = vld [vmem:[#allocation8 + $0x228] sm:$0xff]
    %v167 = vld [vmem:[#allocation8 + $0x230] sm:$0xff]
    %v168 = vld [vmem:[#allocation8 + $0x238] sm:$0xff]
    %v169 = vld [vmem:[#allocation8 + $0x240] sm:$0xff]
    %v170 = vld [vmem:[#allocation8 + $0x248] sm:$0xff]
    %v171 = vld [vmem:[#allocation8 + $0x250] sm:$0xff]
    %v172 = vld [vmem:[#allocation8 + $0x258] sm:$0xff]
    %v173 = vld [vmem:[#allocation8 + $0x260] sm:$0xff]
    %v174 = vld [vmem:[#allocation8 + $0x268] sm:$0xff]
    %v175 = vld [vmem:[#allocation8 + $0x270] sm:$0xff]
    %v176 = vld [vmem:[#allocation8 + $0x278] sm:$0xff]
    %v177 = vld [vmem:[#allocation8 + $0x280] sm:$0xff]
    %v178 = vld [vmem:[#allocation8 + $0x288] sm:$0xff]
    %v179 = vld [vmem:[#allocation8 + $0x290] sm:$0xff]
    %v180 = vld [vmem:[#allocation8 + $0x298] sm:$0xff]
    %v181 = vld [vmem:[#allocation8 + $0x2a0] sm:$0xff]
    %v182 = vld [vmem:[#allocation8 + $0x2a8] sm:$0xff]
    %v183 = vld [vmem:[#allocation8 + $0x2b0] sm:$0xff]
    %v184 = vld [vmem:[#allocation8 + $0x2b8] sm:$0xff]
    %v185 = vld [vmem:[#allocation8 + $0x2c0] sm:$0xff]
    %v186 = vld [vmem:[#allocation8 + $0x2c8] sm:$0xff]
    %v187 = vld [vmem:[#allocation8 + $0x2d0] sm:$0xff]
    %v188 = vld [vmem:[#allocation8 + $0x2d8] sm:$0xff]
    %v189 = vld [vmem:[#allocation8 + $0x2e0] sm:$0xff]
    %v190 = vld [vmem:[#allocation8 + $0x2e8] sm:$0xff]
    %v191 = vld [vmem:[#allocation8 + $0x2f0] sm:$0xff]
    %v192 = vld [vmem:[#allocation8 + $0x2f8] sm:$0xff]
    %v193 = vld [vmem:[#allocation8 + $0x300] sm:$0xff]
    %v194 = vld [vmem:[#allocation8 + $0x308] sm:$0xff]
    %v195 = vld [vmem:[#allocation8 + $0x310] sm:$0xff]
    %v196 = vld [vmem:[#allocation8 + $0x318] sm:$0xff]
    %v197 = vld [vmem:[#allocation8 + $0x320] sm:$0xff]
    %v198 = vld [vmem:[#allocation8 + $0x328] sm:$0xff]
    %v199 = vld [vmem:[#allocation8 + $0x330] sm:$0xff]
    %v200 = vld [vmem:[#allocation8 + $0x338] sm:$0xff]
    %v201 = vld [vmem:[#allocation8 + $0x340] sm:$0xff]
    %v202 = vld [vmem:[#allocation8 + $0x348] sm:$0xff]
    %v203 = vld [vmem:[#allocation8 + $0x350] sm:$0xff]
    %v204 = vld [vmem:[#allocation8 + $0x358] sm:$0xff]
    %v205 = vld [vmem:[#allocation8 + $0x360] sm:$0xff]
    %v206 = vld [vmem:[#allocation8 + $0x368] sm:$0xff]
    %v207 = vld [vmem:[#allocation8 + $0x370] sm:$0xff]
    %v208 = vld [vmem:[#allocation8 + $0x378] sm:$0xff]
    %v209 = vld [vmem:[#allocation8 + $0x380] sm:$0xff]
    %v210 = vld [vmem:[#allocation8 + $0x388] sm:$0xff]
    %v211 = vld [vmem:[#allocation8 + $0x390] sm:$0xff]
    %v212 = vld [vmem:[#allocation8 + $0x398] sm:$0xff]
    %v213 = vld [vmem:[#allocation8 + $0x3a0] sm:$0xff]
    %v214 = vld [vmem:[#allocation8 + $0x3a8] sm:$0xff]
    %v215 = vld [vmem:[#allocation8 + $0x3b0] sm:$0xff]
    %v216 = vld [vmem:[#allocation8 + $0x3b8] sm:$0xff]
    %v217 = vld [vmem:[#allocation8 + $0x3c0] sm:$0xff]
    %v218 = vld [vmem:[#allocation8 + $0x3c8] sm:$0xff]
    %v219 = vld [vmem:[#allocation8 + $0x3d0] sm:$0xff]
    %v220 = vld [vmem:[#allocation8 + $0x3d8] sm:$0xff]
    %v221 = vld [vmem:[#allocation8 + $0x3e0] sm:$0xff]
    %v222 = vld [vmem:[#allocation8 + $0x3e8] sm:$0xff]
    %v223 = vld [vmem:[#allocation8 + $0x3f0] sm:$0xff]
    %v224 = vld [vmem:[#allocation8 + $0x3f8] sm:$0xff]
    %v227 = vunpack.c.l.b16 %v159
    %v228 = vunpack.c.h.b16 %v159
    %v229 = vunpack.c.l.b16 %v160
    %v230 = vunpack.c.h.b16 %v160
    %v231 = vpack.c.b16 %v227, %v227
    %v232 = vpack.c.b16 %v228, %v228
    %v233 = vpack.c.b16 %v229, %v229
    %v234 = vpack.c.b16 %v230, %v230
    %v303 = vunpack.c.l.b16 %v161
    %v304 = vunpack.c.h.b16 %v161
    %v305 = vunpack.c.l.b16 %v162
    %v306 = vunpack.c.h.b16 %v162
    %v307 = vunpack.c.l.b16 %v163
    %v308 = vunpack.c.h.b16 %v163
    %v309 = vunpack.c.l.b16 %v164
    %v310 = vunpack.c.h.b16 %v164
    %v311 = vunpack.c.l.b16 %v165
    %v312 = vunpack.c.h.b16 %v165
    %v313 = vunpack.c.l.b16 %v166
    %v314 = vunpack.c.h.b16 %v166
    %v315 = vunpack.c.l.b16 %v167
    %v316 = vunpack.c.h.b16 %v167
    %v317 = vunpack.c.l.b16 %v168
    %v318 = vunpack.c.h.b16 %v168
    %v319 = vunpack.c.l.b16 %v169
    %v320 = vunpack.c.h.b16 %v169
    %v321 = vunpack.c.l.b16 %v170
    %v322 = vunpack.c.h.b16 %v170
    %v323 = vunpack.c.l.b16 %v171
    %v324 = vunpack.c.h.b16 %v171
    %v325 = vunpack.c.l.b16 %v172
    %v326 = vunpack.c.h.b16 %v172
    %v327 = vunpack.c.l.b16 %v173
    %v328 = vunpack.c.h.b16 %v173
    %v329 = vunpack.c.l.b16 %v174
    %v330 = vunpack.c.h.b16 %v174
    %v331 = vunpack.c.l.b16 %v175
    %v332 = vunpack.c.h.b16 %v175
    %v333 = vunpack.c.l.b16 %v176
    %v334 = vunpack.c.h.b16 %v176
    %v335 = vunpack.c.l.b16 %v177
    %v336 = vunpack.c.h.b16 %v177
    %v337 = vunpack.c.l.b16 %v178
    %v338 = vunpack.c.h.b16 %v178
    %v339 = vunpack.c.l.b16 %v179
    %v340 = vunpack.c.h.b16 %v179
    %v341 = vunpack.c.l.b16 %v180
    %v342 = vunpack.c.h.b16 %v180
    %v343 = vunpack.c.l.b16 %v181
    %v344 = vunpack.c.h.b16 %v181
    %v345 = vunpack.c.l.b16 %v182
    %v346 = vunpack.c.h.b16 %v182
    %v347 = vunpack.c.l.b16 %v183
    %v348 = vunpack.c.h.b16 %v183
    %v349 = vunpack.c.l.b16 %v184
    %v350 = vunpack.c.h.b16 %v184
    %v351 = vunpack.c.l.b16 %v185
    %v352 = vunpack.c.h.b16 %v185
    %v353 = vunpack.c.l.b16 %v186
    %v354 = vunpack.c.h.b16 %v186
    %v355 = vunpack.c.l.b16 %v187
    %v356 = vunpack.c.h.b16 %v187
    %v357 = vunpack.c.l.b16 %v188
    %v358 = vunpack.c.h.b16 %v188
    %v359 = vunpack.c.l.b16 %v189
    %v360 = vunpack.c.h.b16 %v189
    %v361 = vunpack.c.l.b16 %v190
    %v362 = vunpack.c.h.b16 %v190
    %v363 = vunpack.c.l.b16 %v191
    %v364 = vunpack.c.h.b16 %v191
    %v365 = vunpack.c.l.b16 %v192
    %v366 = vunpack.c.h.b16 %v192
    %v367 = vunpack.c.l.b16 %v193
    %v368 = vunpack.c.h.b16 %v193
    %v369 = vunpack.c.l.b16 %v194
    %v370 = vunpack.c.h.b16 %v194
    %v371 = vunpack.c.l.b16 %v195
    %v372 = vunpack.c.h.b16 %v195
    %v373 = vunpack.c.l.b16 %v196
    %v374 = vunpack.c.h.b16 %v196
    %v375 = vunpack.c.l.b16 %v197
    %v376 = vunpack.c.h.b16 %v197
    %v377 = vunpack.c.l.b16 %v198
    %v378 = vunpack.c.h.b16 %v198
    %v379 = vunpack.c.l.b16 %v199
    %v380 = vunpack.c.h.b16 %v199
    %v381 = vunpack.c.l.b16 %v200
    %v382 = vunpack.c.h.b16 %v200
    %v383 = vunpack.c.l.b16 %v201
    %v384 = vunpack.c.h.b16 %v201
    %v385 = vunpack.c.l.b16 %v202
    %v386 = vunpack.c.h.b16 %v202
    %v387 = vunpack.c.l.b16 %v203
    %v388 = vunpack.c.h.b16 %v203
    %v389 = vunpack.c.l.b16 %v204
    %v390 = vunpack.c.h.b16 %v204
    %v391 = vunpack.c.l.b16 %v205
    %v392 = vunpack.c.h.b16 %v205
    %v393 = vunpack.c.l.b16 %v206
    %v394 = vunpack.c.h.b16 %v206
    %v395 = vunpack.c.l.b16 %v207
    %v396 = vunpack.c.h.b16 %v207
    %v397 = vunpack.c.l.b16 %v208
    %v398 = vunpack.c.h.b16 %v208
    %v399 = vunpack.c.l.b16 %v209
    %v400 = vunpack.c.h.b16 %v209
    %v401 = vunpack.c.l.b16 %v210
    %v402 = vunpack.c.h.b16 %v210
    %v403 = vunpack.c.l.b16 %v211
    %v404 = vunpack.c.h.b16 %v211
    %v405 = vunpack.c.l.b16 %v212
    %v406 = vunpack.c.h.b16 %v212
    %v407 = vunpack.c.l.b16 %v213
    %v408 = vunpack.c.h.b16 %v213
    %v409 = vunpack.c.l.b16 %v214
    %v410 = vunpack.c.h.b16 %v214
    %v411 = vunpack.c.l.b16 %v215
    %v412 = vunpack.c.h.b16 %v215
    %v413 = vunpack.c.l.b16 %v216
    %v414 = vunpack.c.h.b16 %v216
    %v415 = vunpack.c.l.b16 %v217
    %v416 = vunpack.c.h.b16 %v217
    %v417 = vunpack.c.l.b16 %v218
    %v418 = vunpack.c.h.b16 %v218
    %v419 = vunpack.c.l.b16 %v219
    %v420 = vunpack.c.h.b16 %v219
    %v421 = vunpack.c.l.b16 %v220
    %v422 = vunpack.c.h.b16 %v220
    %v423 = vunpack.c.l.b16 %v221
    %v424 = vunpack.c.h.b16 %v221
    %v425 = vunpack.c.l.b16 %v222
    %v426 = vunpack.c.h.b16 %v222
    %v427 = vunpack.c.l.b16 %v223
    %v428 = vunpack.c.h.b16 %v223
    %v429 = vunpack.c.l.b16 %v224
    %v430 = vunpack.c.h.b16 %v224
    %v431 = vpack.c.b16 %v305, %v303
    %v432 = vpack.c.b16 %v306, %v304
    %v433 = vpack.c.b16 %v309, %v307
    %v434 = vpack.c.b16 %v310, %v308
    %v435 = vpack.c.b16 %v313, %v311
    %v436 = vpack.c.b16 %v314, %v312
    %v437 = vpack.c.b16 %v317, %v315
    %v438 = vpack.c.b16 %v318, %v316
    %v439 = vpack.c.b16 %v321, %v319
    %v440 = vpack.c.b16 %v322, %v320
    %v441 = vpack.c.b16 %v325, %v323
    %v442 = vpack.c.b16 %v326, %v324
    %v443 = vpack.c.b16 %v329, %v327
    %v444 = vpack.c.b16 %v330, %v328
    %v445 = vpack.c.b16 %v333, %v331
    %v446 = vpack.c.b16 %v334, %v332
    %v447 = vpack.c.b16 %v337, %v335
    %v448 = vpack.c.b16 %v338, %v336
    %v449 = vpack.c.b16 %v341, %v339
    %v450 = vpack.c.b16 %v342, %v340
    %v451 = vpack.c.b16 %v345, %v343
    %v452 = vpack.c.b16 %v346, %v344
    %v453 = vpack.c.b16 %v349, %v347
    %v454 = vpack.c.b16 %v350, %v348
    %v455 = vpack.c.b16 %v353, %v351
    %v456 = vpack.c.b16 %v354, %v352
    %v457 = vpack.c.b16 %v357, %v355
    %v458 = vpack.c.b16 %v358, %v356
    %v459 = vpack.c.b16 %v361, %v359
    %v460 = vpack.c.b16 %v362, %v360
    %v461 = vpack.c.b16 %v365, %v363
    %v462 = vpack.c.b16 %v366, %v364
    %v463 = vpack.c.b16 %v369, %v367
    %v464 = vpack.c.b16 %v370, %v368
    %v465 = vpack.c.b16 %v373, %v371
    %v466 = vpack.c.b16 %v374, %v372
    %v467 = vpack.c.b16 %v377, %v375
    %v468 = vpack.c.b16 %v378, %v376
    %v469 = vpack.c.b16 %v381, %v379
    %v470 = vpack.c.b16 %v382, %v380
    %v471 = vpack.c.b16 %v385, %v383
    %v472 = vpack.c.b16 %v386, %v384
    %v473 = vpack.c.b16 %v389, %v387
    %v474 = vpack.c.b16 %v390, %v388
    %v475 = vpack.c.b16 %v393, %v391
    %v476 = vpack.c.b16 %v394, %v392
    %v477 = vpack.c.b16 %v397, %v395
    %v478 = vpack.c.b16 %v398, %v396
    %v479 = vpack.c.b16 %v401, %v399
    %v480 = vpack.c.b16 %v402, %v400
    %v481 = vpack.c.b16 %v405, %v403
    %v482 = vpack.c.b16 %v406, %v404
    %v483 = vpack.c.b16 %v409, %v407
    %v484 = vpack.c.b16 %v410, %v408
    %v485 = vpack.c.b16 %v413, %v411
    %v486 = vpack.c.b16 %v414, %v412
    %v487 = vpack.c.b16 %v417, %v415
    %v488 = vpack.c.b16 %v418, %v416
    %v489 = vpack.c.b16 %v421, %v419
    %v490 = vpack.c.b16 %v422, %v420
    %v491 = vpack.c.b16 %v425, %v423
    %v492 = vpack.c.b16 %v426, %v424
    %v493 = vpack.c.b16 %v429, %v427
    %v494 = vpack.c.b16 %v430, %v428
    %559 = vmatprep.subr.bf16.mxu0 %v446
    %560 = vmatpush1.bf16.msra.mxu0 %v445
    %561 = vmatprep.subr.bf16.mxu0 %v444
    %562 = vmatpush1.bf16.msra.mxu0 %v443
    %563 = vmatprep.subr.bf16.mxu0 %v442
    %564 = vmatpush1.bf16.msra.mxu0 %v441
    %565 = vmatprep.subr.bf16.mxu0 %v440
    %566 = vmatpush1.bf16.msra.mxu0 %v439
    %567 = vmatprep.subr.bf16.mxu0 %v438
    %568 = vmatpush1.bf16.msra.mxu0 %v437
    %569 = vmatprep.subr.bf16.mxu0 %v436
    %570 = vmatpush1.bf16.msra.mxu0 %v435
    %571 = vmatprep.subr.bf16.mxu0 %v434
    %572 = vmatpush1.bf16.msra.mxu0 %v433
    %573 = vmatprep.subr.bf16.mxu0 %v432
    %574 = vmatpush1.bf16.msra.mxu0 %v431
    %575 = vmatprep.subr.bf16.mxu0 %v462
    %576 = vmatpush2.bf16.msra.mxu0 %v461
    %577 = vmatprep.subr.bf16.mxu0 %v460
    %578 = vmatpush2.bf16.msra.mxu0 %v459
    %579 = vmatprep.subr.bf16.mxu0 %v458
    %580 = vmatpush2.bf16.msra.mxu0 %v457
    %581 = vmatprep.subr.bf16.mxu0 %v456
    %582 = vmatpush2.bf16.msra.mxu0 %v455
    %583 = vmatprep.subr.bf16.mxu0 %v454
    %584 = vmatpush2.bf16.msra.mxu0 %v453
    %585 = vmatprep.subr.bf16.mxu0 %v452
    %586 = vmatpush2.bf16.msra.mxu0 %v451
    %587 = vmatprep.subr.bf16.mxu0 %v450
    %588 = vmatpush2.bf16.msra.mxu0 %v449
    %589 = vmatprep.subr.bf16.mxu0 %v448
    %590 = vmatpush2.bf16.msra.mxu0 %v447
    %591 = vmatprep.mubr.bf16.mxu0 %v232
    %592 = vmatmul.mubr.bf16.gmra.mxu0 %v231
    %v593 = vpop.f32.mrf.mxu0
    %v594 = vadd.f32 0.0, %v593
    %v595 = vpop.f32.mrf.mxu0
    %v596 = vadd.f32 0.0, %v595
    %v597 = vpop.f32.mrf.mxu0
    %v598 = vpop.f32.mrf.mxu0
    %599 = vdwg.mxu0
    %600 = vmatprep.subr.bf16.mxu0 %v478
    %601 = vmatpush1.bf16.msra.mxu0 %v477
    %602 = vmatprep.subr.bf16.mxu0 %v476
    %603 = vmatpush1.bf16.msra.mxu0 %v475
    %604 = vmatprep.subr.bf16.mxu0 %v474
    %605 = vmatpush1.bf16.msra.mxu0 %v473
    %606 = vmatprep.subr.bf16.mxu0 %v472
    %607 = vmatpush1.bf16.msra.mxu0 %v471
    %608 = vmatprep.subr.bf16.mxu0 %v470
    %609 = vmatpush1.bf16.msra.mxu0 %v469
    %610 = vmatprep.subr.bf16.mxu0 %v468
    %611 = vmatpush1.bf16.msra.mxu0 %v467
    %612 = vmatprep.subr.bf16.mxu0 %v466
    %613 = vmatpush1.bf16.msra.mxu0 %v465
    %614 = vmatprep.subr.bf16.mxu0 %v464
    %615 = vmatpush1.bf16.msra.mxu0 %v463
    %616 = vmatprep.subr.bf16.mxu0 %v494
    %617 = vmatpush2.bf16.msra.mxu0 %v493
    %618 = vmatprep.subr.bf16.mxu0 %v492
    %619 = vmatpush2.bf16.msra.mxu0 %v491
    %620 = vmatprep.subr.bf16.mxu0 %v490
    %621 = vmatpush2.bf16.msra.mxu0 %v489
    %622 = vmatprep.subr.bf16.mxu0 %v488
    %623 = vmatpush2.bf16.msra.mxu0 %v487
    %624 = vmatprep.subr.bf16.mxu0 %v486
    %625 = vmatpush2.bf16.msra.mxu0 %v485
    %626 = vmatprep.subr.bf16.mxu0 %v484
    %627 = vmatpush2.bf16.msra.mxu0 %v483
    %628 = vmatprep.subr.bf16.mxu0 %v482
    %629 = vmatpush2.bf16.msra.mxu0 %v481
    %630 = vmatprep.subr.bf16.mxu0 %v480
    %631 = vmatpush2.bf16.msra.mxu0 %v479
    %632 = vmatprep.mubr.bf16.mxu0 %v234
    %633 = vmatmul.mubr.bf16.gmra.mxu0 %v233
    %v634 = vpop.f32.mrf.mxu0
    %v635 = vadd.f32 %v594, %v634
    %v636 = vpop.f32.mrf.mxu0
    %v637 = vadd.f32 %v596, %v636
    %v638 = vpop.f32.mrf.mxu0
    %v639 = vpop.f32.mrf.mxu0
    %640 = vdwg.mxu0
    %v643 = vunpack.c.l.b16 %v93
    %v644 = vunpack.c.h.b16 %v93
    %v645 = vunpack.c.l.b16 %v94
    %v646 = vunpack.c.h.b16 %v94
    %v647 = vpack.c.b16 %v643, %v643
    %v648 = vpack.c.b16 %v644, %v644
    %v649 = vpack.c.b16 %v645, %v645
    %v650 = vpack.c.b16 %v646, %v646
    %v719 = vunpack.c.l.b16 %v95
    %v720 = vunpack.c.h.b16 %v95
    %v721 = vunpack.c.l.b16 %v96
    %v722 = vunpack.c.h.b16 %v96
    %v723 = vunpack.c.l.b16 %v97
    %v724 = vunpack.c.h.b16 %v97
    %v725 = vunpack.c.l.b16 %v98
    %v726 = vunpack.c.h.b16 %v98
    %v727 = vunpack.c.l.b16 %v99
    %v728 = vunpack.c.h.b16 %v99
    %v729 = vunpack.c.l.b16 %v100
    %v730 = vunpack.c.h.b16 %v100
    %v731 = vunpack.c.l.b16 %v101
    %v732 = vunpack.c.h.b16 %v101
    %v733 = vunpack.c.l.b16 %v102
    %v734 = vunpack.c.h.b16 %v102
    %v735 = vunpack.c.l.b16 %v103
    %v736 = vunpack.c.h.b16 %v103
    %v737 = vunpack.c.l.b16 %v104
    %v738 = vunpack.c.h.b16 %v104
    %v739 = vunpack.c.l.b16 %v105
    %v740 = vunpack.c.h.b16 %v105
    %v741 = vunpack.c.l.b16 %v106
    %v742 = vunpack.c.h.b16 %v106
    %v743 = vunpack.c.l.b16 %v107
    %v744 = vunpack.c.h.b16 %v107
    %v745 = vunpack.c.l.b16 %v108
    %v746 = vunpack.c.h.b16 %v108
    %v747 = vunpack.c.l.b16 %v109
    %v748 = vunpack.c.h.b16 %v109
    %v749 = vunpack.c.l.b16 %v110
    %v750 = vunpack.c.h.b16 %v110
    %v751 = vunpack.c.l.b16 %v111
    %v752 = vunpack.c.h.b16 %v111
    %v753 = vunpack.c.l.b16 %v112
    %v754 = vunpack.c.h.b16 %v112
    %v755 = vunpack.c.l.b16 %v113
    %v756 = vunpack.c.h.b16 %v113
    %v757 = vunpack.c.l.b16 %v114
    %v758 = vunpack.c.h.b16 %v114
    %v759 = vunpack.c.l.b16 %v115
    %v760 = vunpack.c.h.b16 %v115
    %v761 = vunpack.c.l.b16 %v116
    %v762 = vunpack.c.h.b16 %v116
    %v763 = vunpack.c.l.b16 %v117
    %v764 = vunpack.c.h.b16 %v117
    %v765 = vunpack.c.l.b16 %v118
    %v766 = vunpack.c.h.b16 %v118
    %v767 = vunpack.c.l.b16 %v119
    %v768 = vunpack.c.h.b16 %v119
    %v769 = vunpack.c.l.b16 %v120
    %v770 = vunpack.c.h.b16 %v120
    %v771 = vunpack.c.l.b16 %v121
    %v772 = vunpack.c.h.b16 %v121
    %v773 = vunpack.c.l.b16 %v122
    %v774 = vunpack.c.h.b16 %v122
    %v775 = vunpack.c.l.b16 %v123
    %v776 = vunpack.c.h.b16 %v123
    %v777 = vunpack.c.l.b16 %v124
    %v778 = vunpack.c.h.b16 %v124
    %v779 = vunpack.c.l.b16 %v125
    %v780 = vunpack.c.h.b16 %v125
    %v781 = vunpack.c.l.b16 %v126
    %v782 = vunpack.c.h.b16 %v126
    %v783 = vunpack.c.l.b16 %v127
    %v784 = vunpack.c.h.b16 %v127
    %v785 = vunpack.c.l.b16 %v128
    %v786 = vunpack.c.h.b16 %v128
    %v787 = vunpack.c.l.b16 %v129
    %v788 = vunpack.c.h.b16 %v129
    %v789 = vunpack.c.l.b16 %v130
    %v790 = vunpack.c.h.b16 %v130
    %v791 = vunpack.c.l.b16 %v131
    %v792 = vunpack.c.h.b16 %v131
    %v793 = vunpack.c.l.b16 %v132
    %v794 = vunpack.c.h.b16 %v132
    %v795 = vunpack.c.l.b16 %v133
    %v796 = vunpack.c.h.b16 %v133
    %v797 = vunpack.c.l.b16 %v134
    %v798 = vunpack.c.h.b16 %v134
    %v799 = vunpack.c.l.b16 %v135
    %v800 = vunpack.c.h.b16 %v135
    %v801 = vunpack.c.l.b16 %v136
    %v802 = vunpack.c.h.b16 %v136
    %v803 = vunpack.c.l.b16 %v137
    %v804 = vunpack.c.h.b16 %v137
    %v805 = vunpack.c.l.b16 %v138
    %v806 = vunpack.c.h.b16 %v138
    %v807 = vunpack.c.l.b16 %v139
    %v808 = vunpack.c.h.b16 %v139
    %v809 = vunpack.c.l.b16 %v140
    %v810 = vunpack.c.h.b16 %v140
    %v811 = vunpack.c.l.b16 %v141
    %v812 = vunpack.c.h.b16 %v141
    %v813 = vunpack.c.l.b16 %v142
    %v814 = vunpack.c.h.b16 %v142
    %v815 = vunpack.c.l.b16 %v143
    %v816 = vunpack.c.h.b16 %v143
    %v817 = vunpack.c.l.b16 %v144
    %v818 = vunpack.c.h.b16 %v144
    %v819 = vunpack.c.l.b16 %v145
    %v820 = vunpack.c.h.b16 %v145
    %v821 = vunpack.c.l.b16 %v146
    %v822 = vunpack.c.h.b16 %v146
    %v823 = vunpack.c.l.b16 %v147
    %v824 = vunpack.c.h.b16 %v147
    %v825 = vunpack.c.l.b16 %v148
    %v826 = vunpack.c.h.b16 %v148
    %v827 = vunpack.c.l.b16 %v149
    %v828 = vunpack.c.h.b16 %v149
    %v829 = vunpack.c.l.b16 %v150
    %v830 = vunpack.c.h.b16 %v150
    %v831 = vunpack.c.l.b16 %v151
    %v832 = vunpack.c.h.b16 %v151
    %v833 = vunpack.c.l.b16 %v152
    %v834 = vunpack.c.h.b16 %v152
    %v835 = vunpack.c.l.b16 %v153
    %v836 = vunpack.c.h.b16 %v153
    %v837 = vunpack.c.l.b16 %v154
    %v838 = vunpack.c.h.b16 %v154
    %v839 = vunpack.c.l.b16 %v155
    %v840 = vunpack.c.h.b16 %v155
    %v841 = vunpack.c.l.b16 %v156
    %v842 = vunpack.c.h.b16 %v156
    %v843 = vunpack.c.l.b16 %v157
    %v844 = vunpack.c.h.b16 %v157
    %v845 = vunpack.c.l.b16 %v158
    %v846 = vunpack.c.h.b16 %v158
    %v847 = vpack.c.b16 %v721, %v719
    %v848 = vpack.c.b16 %v722, %v720
    %v849 = vpack.c.b16 %v725, %v723
    %v850 = vpack.c.b16 %v726, %v724
    %v851 = vpack.c.b16 %v729, %v727
    %v852 = vpack.c.b16 %v730, %v728
    %v853 = vpack.c.b16 %v733, %v731
    %v854 = vpack.c.b16 %v734, %v732
    %v855 = vpack.c.b16 %v737, %v735
    %v856 = vpack.c.b16 %v738, %v736
    %v857 = vpack.c.b16 %v741, %v739
    %v858 = vpack.c.b16 %v742, %v740
    %v859 = vpack.c.b16 %v745, %v743
    %v860 = vpack.c.b16 %v746, %v744
    %v861 = vpack.c.b16 %v749, %v747
    %v862 = vpack.c.b16 %v750, %v748
    %v863 = vpack.c.b16 %v753, %v751
    %v864 = vpack.c.b16 %v754, %v752
    %v865 = vpack.c.b16 %v757, %v755
    %v866 = vpack.c.b16 %v758, %v756
    %v867 = vpack.c.b16 %v761, %v759
    %v868 = vpack.c.b16 %v762, %v760
    %v869 = vpack.c.b16 %v765, %v763
    %v870 = vpack.c.b16 %v766, %v764
    %v871 = vpack.c.b16 %v769, %v767
    %v872 = vpack.c.b16 %v770, %v768
    %v873 = vpack.c.b16 %v773, %v771
    %v874 = vpack.c.b16 %v774, %v772
    %v875 = vpack.c.b16 %v777, %v775
    %v876 = vpack.c.b16 %v778, %v776
    %v877 = vpack.c.b16 %v781, %v779
    %v878 = vpack.c.b16 %v782, %v780
    %v879 = vpack.c.b16 %v785, %v783
    %v880 = vpack.c.b16 %v786, %v784
    %v881 = vpack.c.b16 %v789, %v787
    %v882 = vpack.c.b16 %v790, %v788
    %v883 = vpack.c.b16 %v793, %v791
    %v884 = vpack.c.b16 %v794, %v792
    %v885 = vpack.c.b16 %v797, %v795
    %v886 = vpack.c.b16 %v798, %v796
    %v887 = vpack.c.b16 %v801, %v799
    %v888 = vpack.c.b16 %v802, %v800
    %v889 = vpack.c.b16 %v805, %v803
    %v890 = vpack.c.b16 %v806, %v804
    %v891 = vpack.c.b16 %v809, %v807
    %v892 = vpack.c.b16 %v810, %v808
    %v893 = vpack.c.b16 %v813, %v811
    %v894 = vpack.c.b16 %v814, %v812
    %v895 = vpack.c.b16 %v817, %v815
    %v896 = vpack.c.b16 %v818, %v816
    %v897 = vpack.c.b16 %v821, %v819
    %v898 = vpack.c.b16 %v822, %v820
    %v899 = vpack.c.b16 %v825, %v823
    %v900 = vpack.c.b16 %v826, %v824
    %v901 = vpack.c.b16 %v829, %v827
    %v902 = vpack.c.b16 %v830, %v828
    %v903 = vpack.c.b16 %v833, %v831
    %v904 = vpack.c.b16 %v834, %v832
    %v905 = vpack.c.b16 %v837, %v835
    %v906 = vpack.c.b16 %v838, %v836
    %v907 = vpack.c.b16 %v841, %v839
    %v908 = vpack.c.b16 %v842, %v840
    %v909 = vpack.c.b16 %v845, %v843
    %v910 = vpack.c.b16 %v846, %v844
    %975 = vmatprep.subr.bf16.mxu0 %v862
    %976 = vmatpush1.bf16.msra.mxu0 %v861
    %977 = vmatprep.subr.bf16.mxu0 %v860
    %978 = vmatpush1.bf16.msra.mxu0 %v859
    %979 = vmatprep.subr.bf16.mxu0 %v858
    %980 = vmatpush1.bf16.msra.mxu0 %v857
    %981 = vmatprep.subr.bf16.mxu0 %v856
    %982 = vmatpush1.bf16.msra.mxu0 %v855
    %983 = vmatprep.subr.bf16.mxu0 %v854
    %984 = vmatpush1.bf16.msra.mxu0 %v853
    %985 = vmatprep.subr.bf16.mxu0 %v852
    %986 = vmatpush1.bf16.msra.mxu0 %v851
    %987 = vmatprep.subr.bf16.mxu0 %v850
    %988 = vmatpush1.bf16.msra.mxu0 %v849
    %989 = vmatprep.subr.bf16.mxu0 %v848
    %990 = vmatpush1.bf16.msra.mxu0 %v847
    %991 = vmatprep.subr.bf16.mxu0 %v878
    %992 = vmatpush2.bf16.msra.mxu0 %v877
    %993 = vmatprep.subr.bf16.mxu0 %v876
    %994 = vmatpush2.bf16.msra.mxu0 %v875
    %995 = vmatprep.subr.bf16.mxu0 %v874
    %996 = vmatpush2.bf16.msra.mxu0 %v873
    %997 = vmatprep.subr.bf16.mxu0 %v872
    %998 = vmatpush2.bf16.msra.mxu0 %v871
    %999 = vmatprep.subr.bf16.mxu0 %v870
    %1000 = vmatpush2.bf16.msra.mxu0 %v869
    %1001 = vmatprep.subr.bf16.mxu0 %v868
    %1002 = vmatpush2.bf16.msra.mxu0 %v867
    %1003 = vmatprep.subr.bf16.mxu0 %v866
    %1004 = vmatpush2.bf16.msra.mxu0 %v865
    %1005 = vmatprep.subr.bf16.mxu0 %v864
    %1006 = vmatpush2.bf16.msra.mxu0 %v863
    %1007 = vmatprep.mubr.bf16.mxu0 %v648
    %1008 = vmatmul.mubr.bf16.gmra.mxu0 %v647
    %v1009 = vpop.f32.mrf.mxu0
    %v1010 = vadd.f32 %v635, %v1009
    %v1011 = vpop.f32.mrf.mxu0
    %v1012 = vadd.f32 %v637, %v1011
    %v1013 = vpop.f32.mrf.mxu0
    %v1014 = vpop.f32.mrf.mxu0
    %1015 = vdwg.mxu0
    %1016 = vmatprep.subr.bf16.mxu0 %v894
    %1017 = vmatpush1.bf16.msra.mxu0 %v893
    %1018 = vmatprep.subr.bf16.mxu0 %v892
    %1019 = vmatpush1.bf16.msra.mxu0 %v891
    %1020 = vmatprep.subr.bf16.mxu0 %v890
    %1021 = vmatpush1.bf16.msra.mxu0 %v889
    %1022 = vmatprep.subr.bf16.mxu0 %v888
    %1023 = vmatpush1.bf16.msra.mxu0 %v887
    %1024 = vmatprep.subr.bf16.mxu0 %v886
    %1025 = vmatpush1.bf16.msra.mxu0 %v885
    %1026 = vmatprep.subr.bf16.mxu0 %v884
    %1027 = vmatpush1.bf16.msra.mxu0 %v883
    %1028 = vmatprep.subr.bf16.mxu0 %v882
    %1029 = vmatpush1.bf16.msra.mxu0 %v881
    %1030 = vmatprep.subr.bf16.mxu0 %v880
    %1031 = vmatpush1.bf16.msra.mxu0 %v879
    %1032 = vmatprep.subr.bf16.mxu0 %v910
    %1033 = vmatpush2.bf16.msra.mxu0 %v909
    %1034 = vmatprep.subr.bf16.mxu0 %v908
    %1035 = vmatpush2.bf16.msra.mxu0 %v907
    %1036 = vmatprep.subr.bf16.mxu0 %v906
    %1037 = vmatpush2.bf16.msra.mxu0 %v905
    %1038 = vmatprep.subr.bf16.mxu0 %v904
    %1039 = vmatpush2.bf16.msra.mxu0 %v903
    %1040 = vmatprep.subr.bf16.mxu0 %v902
    %1041 = vmatpush2.bf16.msra.mxu0 %v901
    %1042 = vmatprep.subr.bf16.mxu0 %v900
    %1043 = vmatpush2.bf16.msra.mxu0 %v899
    %1044 = vmatprep.subr.bf16.mxu0 %v898
    %1045 = vmatpush2.bf16.msra.mxu0 %v897
    %1046 = vmatprep.subr.bf16.mxu0 %v896
    %1047 = vmatpush2.bf16.msra.mxu0 %v895
    %1048 = vmatprep.mubr.bf16.mxu0 %v650
    %1049 = vmatmul.mubr.bf16.gmra.mxu0 %v649
    %v1050 = vpop.f32.mrf.mxu0
    %v1051 = vadd.f32 %v1010, %v1050
    %v1052 = vpop.f32.mrf.mxu0
    %v1053 = vadd.f32 %v1012, %v1052
    %v1054 = vpop.f32.mrf.mxu0
    %v1055 = vpop.f32.mrf.mxu0
    %1056 = vdwg.mxu0
    %v1057 = vld [vmem:[#allocation7] sm:$0xff]
    %v1058 = vld [vmem:[#allocation7 + $0x8] sm:$0xff]
    %v1059 = vld [vmem:[#allocation8 + $0x400] sm:$0xff]
    %v1060 = vld [vmem:[#allocation8 + $0x408] sm:$0xff]
    %v1061 = vld [vmem:[#allocation8 + $0x410] sm:$0xff]
    %v1062 = vld [vmem:[#allocation8 + $0x418] sm:$0xff]
    %v1063 = vld [vmem:[#allocation8 + $0x420] sm:$0xff]
    %v1064 = vld [vmem:[#allocation8 + $0x428] sm:$0xff]
    %v1065 = vld [vmem:[#allocation8 + $0x430] sm:$0xff]
    %v1066 = vld [vmem:[#allocation8 + $0x438] sm:$0xff]
    %v1067 = vld [vmem:[#allocation8 + $0x440] sm:$0xff]
    %v1068 = vld [vmem:[#allocation8 + $0x448] sm:$0xff]
    %v1069 = vld [vmem:[#allocation8 + $0x450] sm:$0xff]
    %v1070 = vld [vmem:[#allocation8 + $0x458] sm:$0xff]
    %v1071 = vld [vmem:[#allocation8 + $0x460] sm:$0xff]
    %v1072 = vld [vmem:[#allocation8 + $0x468] sm:$0xff]
    %v1073 = vld [vmem:[#allocation8 + $0x470] sm:$0xff]
    %v1074 = vld [vmem:[#allocation8 + $0x478] sm:$0xff]
    %v1075 = vld [vmem:[#allocation8 + $0x480] sm:$0xff]
    %v1076 = vld [vmem:[#allocation8 + $0x488] sm:$0xff]
    %v1077 = vld [vmem:[#allocation8 + $0x490] sm:$0xff]
    %v1078 = vld [vmem:[#allocation8 + $0x498] sm:$0xff]
    %v1079 = vld [vmem:[#allocation8 + $0x4a0] sm:$0xff]
    %v1080 = vld [vmem:[#allocation8 + $0x4a8] sm:$0xff]
    %v1081 = vld [vmem:[#allocation8 + $0x4b0] sm:$0xff]
    %v1082 = vld [vmem:[#allocation8 + $0x4b8] sm:$0xff]
    %v1083 = vld [vmem:[#allocation8 + $0x4c0] sm:$0xff]
    %v1084 = vld [vmem:[#allocation8 + $0x4c8] sm:$0xff]
    %v1085 = vld [vmem:[#allocation8 + $0x4d0] sm:$0xff]
    %v1086 = vld [vmem:[#allocation8 + $0x4d8] sm:$0xff]
    %v1087 = vld [vmem:[#allocation8 + $0x4e0] sm:$0xff]
    %v1088 = vld [vmem:[#allocation8 + $0x4e8] sm:$0xff]
    %v1089 = vld [vmem:[#allocation8 + $0x4f0] sm:$0xff]
    %v1090 = vld [vmem:[#allocation8 + $0x4f8] sm:$0xff]
    %v1091 = vld [vmem:[#allocation8 + $0x500] sm:$0xff]
    %v1092 = vld [vmem:[#allocation8 + $0x508] sm:$0xff]
    %v1093 = vld [vmem:[#allocation8 + $0x510] sm:$0xff]
    %v1094 = vld [vmem:[#allocation8 + $0x518] sm:$0xff]
    %v1095 = vld [vmem:[#allocation8 + $0x520] sm:$0xff]
    %v1096 = vld [vmem:[#allocation8 + $0x528] sm:$0xff]
    %v1097 = vld [vmem:[#allocation8 + $0x530] sm:$0xff]
    %v1098 = vld [vmem:[#allocation8 + $0x538] sm:$0xff]
    %v1099 = vld [vmem:[#allocation8 + $0x540] sm:$0xff]
    %v1100 = vld [vmem:[#allocation8 + $0x548] sm:$0xff]
    %v1101 = vld [vmem:[#allocation8 + $0x550] sm:$0xff]
    %v1102 = vld [vmem:[#allocation8 + $0x558] sm:$0xff]
    %v1103 = vld [vmem:[#allocation8 + $0x560] sm:$0xff]
    %v1104 = vld [vmem:[#allocation8 + $0x568] sm:$0xff]
    %v1105 = vld [vmem:[#allocation8 + $0x570] sm:$0xff]
    %v1106 = vld [vmem:[#allocation8 + $0x578] sm:$0xff]
    %v1107 = vld [vmem:[#allocation8 + $0x580] sm:$0xff]
    %v1108 = vld [vmem:[#allocation8 + $0x588] sm:$0xff]
    %v1109 = vld [vmem:[#allocation8 + $0x590] sm:$0xff]
    %v1110 = vld [vmem:[#allocation8 + $0x598] sm:$0xff]
    %v1111 = vld [vmem:[#allocation8 + $0x5a0] sm:$0xff]
    %v1112 = vld [vmem:[#allocation8 + $0x5a8] sm:$0xff]
    %v1113 = vld [vmem:[#allocation8 + $0x5b0] sm:$0xff]
    %v1114 = vld [vmem:[#allocation8 + $0x5b8] sm:$0xff]
    %v1115 = vld [vmem:[#allocation8 + $0x5c0] sm:$0xff]
    %v1116 = vld [vmem:[#allocation8 + $0x5c8] sm:$0xff]
    %v1117 = vld [vmem:[#allocation8 + $0x5d0] sm:$0xff]
    %v1118 = vld [vmem:[#allocation8 + $0x5d8] sm:$0xff]
    %v1119 = vld [vmem:[#allocation8 + $0x5e0] sm:$0xff]
    %v1120 = vld [vmem:[#allocation8 + $0x5e8] sm:$0xff]
    %v1121 = vld [vmem:[#allocation8 + $0x5f0] sm:$0xff]
    %v1122 = vld [vmem:[#allocation8 + $0x5f8] sm:$0xff]
    %v1125 = vunpack.c.l.b16 %v1057
    %v1126 = vunpack.c.h.b16 %v1057
    %v1127 = vunpack.c.l.b16 %v1058
    %v1128 = vunpack.c.h.b16 %v1058
    %v1129 = vpack.c.b16 %v1125, %v1125
    %v1130 = vpack.c.b16 %v1126, %v1126
    %v1131 = vpack.c.b16 %v1127, %v1127
    %v1132 = vpack.c.b16 %v1128, %v1128
    %v1201 = vunpack.c.l.b16 %v1059
    %v1202 = vunpack.c.h.b16 %v1059
    %v1203 = vunpack.c.l.b16 %v1060
    %v1204 = vunpack.c.h.b16 %v1060
    %v1205 = vunpack.c.l.b16 %v1061
    %v1206 = vunpack.c.h.b16 %v1061
    %v1207 = vunpack.c.l.b16 %v1062
    %v1208 = vunpack.c.h.b16 %v1062
    %v1209 = vunpack.c.l.b16 %v1063
    %v1210 = vunpack.c.h.b16 %v1063
    %v1211 = vunpack.c.l.b16 %v1064
    %v1212 = vunpack.c.h.b16 %v1064
    %v1213 = vunpack.c.l.b16 %v1065
    %v1214 = vunpack.c.h.b16 %v1065
    %v1215 = vunpack.c.l.b16 %v1066
    %v1216 = vunpack.c.h.b16 %v1066
    %v1217 = vunpack.c.l.b16 %v1067
    %v1218 = vunpack.c.h.b16 %v1067
    %v1219 = vunpack.c.l.b16 %v1068
    %v1220 = vunpack.c.h.b16 %v1068
    %v1221 = vunpack.c.l.b16 %v1069
    %v1222 = vunpack.c.h.b16 %v1069
    %v1223 = vunpack.c.l.b16 %v1070
    %v1224 = vunpack.c.h.b16 %v1070
    %v1225 = vunpack.c.l.b16 %v1071
    %v1226 = vunpack.c.h.b16 %v1071
    %v1227 = vunpack.c.l.b16 %v1072
    %v1228 = vunpack.c.h.b16 %v1072
    %v1229 = vunpack.c.l.b16 %v1073
    %v1230 = vunpack.c.h.b16 %v1073
    %v1231 = vunpack.c.l.b16 %v1074
    %v1232 = vunpack.c.h.b16 %v1074
    %v1233 = vunpack.c.l.b16 %v1075
    %v1234 = vunpack.c.h.b16 %v1075
    %v1235 = vunpack.c.l.b16 %v1076
    %v1236 = vunpack.c.h.b16 %v1076
    %v1237 = vunpack.c.l.b16 %v1077
    %v1238 = vunpack.c.h.b16 %v1077
    %v1239 = vunpack.c.l.b16 %v1078
    %v1240 = vunpack.c.h.b16 %v1078
    %v1241 = vunpack.c.l.b16 %v1079
    %v1242 = vunpack.c.h.b16 %v1079
    %v1243 = vunpack.c.l.b16 %v1080
    %v1244 = vunpack.c.h.b16 %v1080
    %v1245 = vunpack.c.l.b16 %v1081
    %v1246 = vunpack.c.h.b16 %v1081
    %v1247 = vunpack.c.l.b16 %v1082
    %v1248 = vunpack.c.h.b16 %v1082
    %v1249 = vunpack.c.l.b16 %v1083
    %v1250 = vunpack.c.h.b16 %v1083
    %v1251 = vunpack.c.l.b16 %v1084
    %v1252 = vunpack.c.h.b16 %v1084
    %v1253 = vunpack.c.l.b16 %v1085
    %v1254 = vunpack.c.h.b16 %v1085
    %v1255 = vunpack.c.l.b16 %v1086
    %v1256 = vunpack.c.h.b16 %v1086
    %v1257 = vunpack.c.l.b16 %v1087
    %v1258 = vunpack.c.h.b16 %v1087
    %v1259 = vunpack.c.l.b16 %v1088
    %v1260 = vunpack.c.h.b16 %v1088
    %v1261 = vunpack.c.l.b16 %v1089
    %v1262 = vunpack.c.h.b16 %v1089
    %v1263 = vunpack.c.l.b16 %v1090
    %v1264 = vunpack.c.h.b16 %v1090
    %v1265 = vunpack.c.l.b16 %v1091
    %v1266 = vunpack.c.h.b16 %v1091
    %v1267 = vunpack.c.l.b16 %v1092
    %v1268 = vunpack.c.h.b16 %v1092
    %v1269 = vunpack.c.l.b16 %v1093
    %v1270 = vunpack.c.h.b16 %v1093
    %v1271 = vunpack.c.l.b16 %v1094
    %v1272 = vunpack.c.h.b16 %v1094
    %v1273 = vunpack.c.l.b16 %v1095
    %v1274 = vunpack.c.h.b16 %v1095
    %v1275 = vunpack.c.l.b16 %v1096
    %v1276 = vunpack.c.h.b16 %v1096
    %v1277 = vunpack.c.l.b16 %v1097
    %v1278 = vunpack.c.h.b16 %v1097
    %v1279 = vunpack.c.l.b16 %v1098
    %v1280 = vunpack.c.h.b16 %v1098
    %v1281 = vunpack.c.l.b16 %v1099
    %v1282 = vunpack.c.h.b16 %v1099
    %v1283 = vunpack.c.l.b16 %v1100
    %v1284 = vunpack.c.h.b16 %v1100
    %v1285 = vunpack.c.l.b16 %v1101
    %v1286 = vunpack.c.h.b16 %v1101
    %v1287 = vunpack.c.l.b16 %v1102
    %v1288 = vunpack.c.h.b16 %v1102
    %v1289 = vunpack.c.l.b16 %v1103
    %v1290 = vunpack.c.h.b16 %v1103
    %v1291 = vunpack.c.l.b16 %v1104
    %v1292 = vunpack.c.h.b16 %v1104
    %v1293 = vunpack.c.l.b16 %v1105
    %v1294 = vunpack.c.h.b16 %v1105
    %v1295 = vunpack.c.l.b16 %v1106
    %v1296 = vunpack.c.h.b16 %v1106
    %v1297 = vunpack.c.l.b16 %v1107
    %v1298 = vunpack.c.h.b16 %v1107
    %v1299 = vunpack.c.l.b16 %v1108
    %v1300 = vunpack.c.h.b16 %v1108
    %v1301 = vunpack.c.l.b16 %v1109
    %v1302 = vunpack.c.h.b16 %v1109
    %v1303 = vunpack.c.l.b16 %v1110
    %v1304 = vunpack.c.h.b16 %v1110
    %v1305 = vunpack.c.l.b16 %v1111
    %v1306 = vunpack.c.h.b16 %v1111
    %v1307 = vunpack.c.l.b16 %v1112
    %v1308 = vunpack.c.h.b16 %v1112
    %v1309 = vunpack.c.l.b16 %v1113
    %v1310 = vunpack.c.h.b16 %v1113
    %v1311 = vunpack.c.l.b16 %v1114
    %v1312 = vunpack.c.h.b16 %v1114
    %v1313 = vunpack.c.l.b16 %v1115
    %v1314 = vunpack.c.h.b16 %v1115
    %v1315 = vunpack.c.l.b16 %v1116
    %v1316 = vunpack.c.h.b16 %v1116
    %v1317 = vunpack.c.l.b16 %v1117
    %v1318 = vunpack.c.h.b16 %v1117
    %v1319 = vunpack.c.l.b16 %v1118
    %v1320 = vunpack.c.h.b16 %v1118
    %v1321 = vunpack.c.l.b16 %v1119
    %v1322 = vunpack.c.h.b16 %v1119
    %v1323 = vunpack.c.l.b16 %v1120
    %v1324 = vunpack.c.h.b16 %v1120
    %v1325 = vunpack.c.l.b16 %v1121
    %v1326 = vunpack.c.h.b16 %v1121
    %v1327 = vunpack.c.l.b16 %v1122
    %v1328 = vunpack.c.h.b16 %v1122
    %v1329 = vpack.c.b16 %v1203, %v1201
    %v1330 = vpack.c.b16 %v1204, %v1202
    %v1331 = vpack.c.b16 %v1207, %v1205
    %v1332 = vpack.c.b16 %v1208, %v1206
    %v1333 = vpack.c.b16 %v1211, %v1209
    %v1334 = vpack.c.b16 %v1212, %v1210
    %v1335 = vpack.c.b16 %v1215, %v1213
    %v1336 = vpack.c.b16 %v1216, %v1214
    %v1337 = vpack.c.b16 %v1219, %v1217
    %v1338 = vpack.c.b16 %v1220, %v1218
    %v1339 = vpack.c.b16 %v1223, %v1221
    %v1340 = vpack.c.b16 %v1224, %v1222
    %v1341 = vpack.c.b16 %v1227, %v1225
    %v1342 = vpack.c.b16 %v1228, %v1226
    %v1343 = vpack.c.b16 %v1231, %v1229
    %v1344 = vpack.c.b16 %v1232, %v1230
    %v1345 = vpack.c.b16 %v1235, %v1233
    %v1346 = vpack.c.b16 %v1236, %v1234
    %v1347 = vpack.c.b16 %v1239, %v1237
    %v1348 = vpack.c.b16 %v1240, %v1238
    %v1349 = vpack.c.b16 %v1243, %v1241
    %v1350 = vpack.c.b16 %v1244, %v1242
    %v1351 = vpack.c.b16 %v1247, %v1245
    %v1352 = vpack.c.b16 %v1248, %v1246
    %v1353 = vpack.c.b16 %v1251, %v1249
    %v1354 = vpack.c.b16 %v1252, %v1250
    %v1355 = vpack.c.b16 %v1255, %v1253
    %v1356 = vpack.c.b16 %v1256, %v1254
    %v1357 = vpack.c.b16 %v1259, %v1257
    %v1358 = vpack.c.b16 %v1260, %v1258
    %v1359 = vpack.c.b16 %v1263, %v1261
    %v1360 = vpack.c.b16 %v1264, %v1262
    %v1361 = vpack.c.b16 %v1267, %v1265
    %v1362 = vpack.c.b16 %v1268, %v1266
    %v1363 = vpack.c.b16 %v1271, %v1269
    %v1364 = vpack.c.b16 %v1272, %v1270
    %v1365 = vpack.c.b16 %v1275, %v1273
    %v1366 = vpack.c.b16 %v1276, %v1274
    %v1367 = vpack.c.b16 %v1279, %v1277
    %v1368 = vpack.c.b16 %v1280, %v1278
    %v1369 = vpack.c.b16 %v1283, %v1281
    %v1370 = vpack.c.b16 %v1284, %v1282
    %v1371 = vpack.c.b16 %v1287, %v1285
    %v1372 = vpack.c.b16 %v1288, %v1286
    %v1373 = vpack.c.b16 %v1291, %v1289
    %v1374 = vpack.c.b16 %v1292, %v1290
    %v1375 = vpack.c.b16 %v1295, %v1293
    %v1376 = vpack.c.b16 %v1296, %v1294
    %v1377 = vpack.c.b16 %v1299, %v1297
    %v1378 = vpack.c.b16 %v1300, %v1298
    %v1379 = vpack.c.b16 %v1303, %v1301
    %v1380 = vpack.c.b16 %v1304, %v1302
    %v1381 = vpack.c.b16 %v1307, %v1305
    %v1382 = vpack.c.b16 %v1308, %v1306
    %v1383 = vpack.c.b16 %v1311, %v1309
    %v1384 = vpack.c.b16 %v1312, %v1310
    %v1385 = vpack.c.b16 %v1315, %v1313
    %v1386 = vpack.c.b16 %v1316, %v1314
    %v1387 = vpack.c.b16 %v1319, %v1317
    %v1388 = vpack.c.b16 %v1320, %v1318
    %v1389 = vpack.c.b16 %v1323, %v1321
    %v1390 = vpack.c.b16 %v1324, %v1322
    %v1391 = vpack.c.b16 %v1327, %v1325
    %v1392 = vpack.c.b16 %v1328, %v1326
    %1457 = vmatprep.subr.bf16.mxu0 %v1344
    %1458 = vmatpush1.bf16.msra.mxu0 %v1343
    %1459 = vmatprep.subr.bf16.mxu0 %v1342
    %1460 = vmatpush1.bf16.msra.mxu0 %v1341
    %1461 = vmatprep.subr.bf16.mxu0 %v1340
    %1462 = vmatpush1.bf16.msra.mxu0 %v1339
    %1463 = vmatprep.subr.bf16.mxu0 %v1338
    %1464 = vmatpush1.bf16.msra.mxu0 %v1337
    %1465 = vmatprep.subr.bf16.mxu0 %v1336
    %1466 = vmatpush1.bf16.msra.mxu0 %v1335
    %1467 = vmatprep.subr.bf16.mxu0 %v1334
    %1468 = vmatpush1.bf16.msra.mxu0 %v1333
    %1469 = vmatprep.subr.bf16.mxu0 %v1332
    %1470 = vmatpush1.bf16.msra.mxu0 %v1331
    %1471 = vmatprep.subr.bf16.mxu0 %v1330
    %1472 = vmatpush1.bf16.msra.mxu0 %v1329
    %1473 = vmatprep.subr.bf16.mxu0 %v1360
    %1474 = vmatpush2.bf16.msra.mxu0 %v1359
    %1475 = vmatprep.subr.bf16.mxu0 %v1358
    %1476 = vmatpush2.bf16.msra.mxu0 %v1357
    %1477 = vmatprep.subr.bf16.mxu0 %v1356
    %1478 = vmatpush2.bf16.msra.mxu0 %v1355
    %1479 = vmatprep.subr.bf16.mxu0 %v1354
    %1480 = vmatpush2.bf16.msra.mxu0 %v1353
    %1481 = vmatprep.subr.bf16.mxu0 %v1352
    %1482 = vmatpush2.bf16.msra.mxu0 %v1351
    %1483 = vmatprep.subr.bf16.mxu0 %v1350
    %1484 = vmatpush2.bf16.msra.mxu0 %v1349
    %1485 = vmatprep.subr.bf16.mxu0 %v1348
    %1486 = vmatpush2.bf16.msra.mxu0 %v1347
    %1487 = vmatprep.subr.bf16.mxu0 %v1346
    %1488 = vmatpush2.bf16.msra.mxu0 %v1345
    %1489 = vmatprep.mubr.bf16.mxu0 %v1130
    %1490 = vmatmul.mubr.bf16.gmra.mxu0 %v1129
    %v1491 = vpop.f32.mrf.mxu0
    %v1492 = vadd.f32 0.0, %v1491
    %v1493 = vpop.f32.mrf.mxu0
    %v1494 = vadd.f32 0.0, %v1493
    %v1495 = vpop.f32.mrf.mxu0
    %v1496 = vpop.f32.mrf.mxu0
    %1497 = vdwg.mxu0
    %1498 = vmatprep.subr.bf16.mxu0 %v1376
    %1499 = vmatpush1.bf16.msra.mxu0 %v1375
    %1500 = vmatprep.subr.bf16.mxu0 %v1374
    %1501 = vmatpush1.bf16.msra.mxu0 %v1373
    %1502 = vmatprep.subr.bf16.mxu0 %v1372
    %1503 = vmatpush1.bf16.msra.mxu0 %v1371
    %1504 = vmatprep.subr.bf16.mxu0 %v1370
    %1505 = vmatpush1.bf16.msra.mxu0 %v1369
    %1506 = vmatprep.subr.bf16.mxu0 %v1368
    %1507 = vmatpush1.bf16.msra.mxu0 %v1367
    %1508 = vmatprep.subr.bf16.mxu0 %v1366
    %1509 = vmatpush1.bf16.msra.mxu0 %v1365
    %1510 = vmatprep.subr.bf16.mxu0 %v1364
    %1511 = vmatpush1.bf16.msra.mxu0 %v1363
    %1512 = vmatprep.subr.bf16.mxu0 %v1362
    %1513 = vmatpush1.bf16.msra.mxu0 %v1361
    %1514 = vmatprep.subr.bf16.mxu0 %v1392
    %1515 = vmatpush2.bf16.msra.mxu0 %v1391
    %1516 = vmatprep.subr.bf16.mxu0 %v1390
    %1517 = vmatpush2.bf16.msra.mxu0 %v1389
    %1518 = vmatprep.subr.bf16.mxu0 %v1388
    %1519 = vmatpush2.bf16.msra.mxu0 %v1387
    %1520 = vmatprep.subr.bf16.mxu0 %v1386
    %1521 = vmatpush2.bf16.msra.mxu0 %v1385
    %1522 = vmatprep.subr.bf16.mxu0 %v1384
    %1523 = vmatpush2.bf16.msra.mxu0 %v1383
    %1524 = vmatprep.subr.bf16.mxu0 %v1382
    %1525 = vmatpush2.bf16.msra.mxu0 %v1381
    %1526 = vmatprep.subr.bf16.mxu0 %v1380
    %1527 = vmatpush2.bf16.msra.mxu0 %v1379
    %1528 = vmatprep.subr.bf16.mxu0 %v1378
    %1529 = vmatpush2.bf16.msra.mxu0 %v1377
    %1530 = vmatprep.mubr.bf16.mxu0 %v1132
    %1531 = vmatmul.mubr.bf16.gmra.mxu0 %v1131
    %v1532 = vpop.f32.mrf.mxu0
    %v1533 = vadd.f32 %v1492, %v1532
    %v1534 = vpop.f32.mrf.mxu0
    %v1535 = vadd.f32 %v1494, %v1534
    %v1536 = vpop.f32.mrf.mxu0
    %v1537 = vpop.f32.mrf.mxu0
    %1538 = vdwg.mxu0
    %v1539 = vadd.f32 %v1051, %v1533
    %v1540 = vadd.f32 %v1053, %v1535
    %v1541 = vrot.slane %v1539, 4
    %v1542 = vadd.f32 %v1539, %v1541
    %v1543 = vrot.slane %v1542, 2
    %v1544 = vadd.f32 %v1542, %v1543
    %v1545 = vrot.slane %v1544, 1
    %v1546 = vadd.f32 %v1544, %v1545
    %v1547 = vrot.slane %v1540, 4
    %v1548 = vadd.f32 %v1540, %v1547
    %v1549 = vrot.slane %v1548, 2
    %v1550 = vadd.f32 %v1548, %v1549
    %v1551 = vrot.slane %v1550, 1
    %v1552 = vadd.f32 %v1550, %v1551
    %v1553 = vrcp.pop 8.0
    %v1554 = vmul.f32 %v1546, %v1553
    %v1555 = vmul.f32 %v1552, %v1553
    %v1556 = vsub.f32 %v1539, %v1554
    %v1557 = vsub.f32 %v1540, %v1555
    %v1558 = vmul.f32 %v1556, %v1556
    %v1559 = vmul.f32 %v1557, %v1557
    %v1560 = vrot.slane %v1558, 4
    %v1561 = vadd.f32 %v1558, %v1560
    %v1562 = vrot.slane %v1561, 2
    %v1563 = vadd.f32 %v1561, %v1562
    %v1564 = vrot.slane %v1563, 1
    %v1565 = vadd.f32 %v1563, %v1564
    %v1566 = vrot.slane %v1559, 4
    %v1567 = vadd.f32 %v1559, %v1566
    %v1568 = vrot.slane %v1567, 2
    %v1569 = vadd.f32 %v1567, %v1568
    %v1570 = vrot.slane %v1569, 1
    %v1571 = vadd.f32 %v1569, %v1570
    %v1572 = vmul.f32 %v1565, %v1553
    %v1573 = vmul.f32 %v1571, %v1553
    %v1574 = vld [vmem:[%s4] sm:$0x3]
    %v1575 = vadd.f32 %v1572, 1e-05
    %v1576 = vadd.f32 %v1573, 1e-05
    %v1577 = vrsqrt.pop %v1575
    %v1578 = vrsqrt.pop %v1576
    %v1581 = vcombine.low %v1577, %v1578
    %v1583 = vunpack.c.l.s4 1966171168
    %v1584 = vunpack.c.0.s8 %v1583
    %v1585 = vlaneseq
    %v1586 = vshrl.u32 %v1585, 7
    %v1587 = vsub.s32 %v1584, %v1586
    %v1588 = vrot.slane %v1581, %v1587
    %v1590 = vunpack.c.l.s4 1966171168
    %v1591 = vunpack.c.0.s8 %v1590
    %v1592 = vlaneseq
    %v1593 = vshrl.u32 %v1592, 7
    %v1594 = vsub.s32 %v1591, %v1593
    %v1595 = vrot.slane %v1588, %v1594
    %v1597 = vmul.f32 %v1574, %v1595
    %v1599 = vlaneseq
    %v1600 = vshrl.u32 %v1599, 7
    %v1601 = vsub.s32 0, %v1600
    %v1602 = vrot.slane %v1597, %v1601
    %v1603 = vlaneseq
    %v1604 = vshrl.u32 %v1603, 7
    %v1605 = vsub.s32 1, %v1604
    %v1606 = vrot.slane %v1597, %v1605
    %v1609 = vmul.f32 %v1556, %v1602
    %v1610 = vmul.f32 %v1557, %v1606
    %v1611 = vld [vmem:[%s5] sm:$0x3]
    %v1613 = vlaneseq
    %v1614 = vshrl.u32 %v1613, 7
    %v1615 = vsub.s32 0, %v1614
    %v1616 = vrot.slane %v1611, %v1615
    %v1617 = vlaneseq
    %v1618 = vshrl.u32 %v1617, 7
    %v1619 = vsub.s32 1, %v1618
    %v1620 = vrot.slane %v1611, %v1619
    %v1623 = vadd.f32 %v1609, %v1616
    %v1624 = vadd.f32 %v1610, %v1620
    %v1625 = vmax.f32 %v1623, 0.0
    %v1626 = vmax.f32 %v1624, 0.0
    %v1627 = vpack.c.bf16 %v1625, %v1625
    %v1628 = vpack.c.bf16 %v1626, %v1626
    %v1629 = vld [vmem:[#allocation10] sm:$0xf]
    %v1630 = vld [vmem:[#allocation10 + $0x4] sm:$0xf]
    %v1631 = vld [vmem:[#allocation10 + $0x8] sm:$0xf]
    %v1632 = vld [vmem:[#allocation10 + $0xc] sm:$0xf]
    %v1633 = vld [vmem:[#allocation10 + $0x10] sm:$0xf]
    %v1634 = vld [vmem:[#allocation10 + $0x14] sm:$0xf]
    %v1635 = vld [vmem:[#allocation10 + $0x18] sm:$0xf]
    %v1636 = vld [vmem:[#allocation10 + $0x1c] sm:$0xf]
    %v1637 = vld [vmem:[#allocation10 + $0x20] sm:$0xf]
    %v1638 = vld [vmem:[#allocation10 + $0x24] sm:$0xf]
    %v1639 = vld [vmem:[#allocation10 + $0x28] sm:$0xf]
    %v1640 = vld [vmem:[#allocation10 + $0x2c] sm:$0xf]
    %v1641 = vld [vmem:[#allocation10 + $0x30] sm:$0xf]
    %v1642 = vld [vmem:[#allocation10 + $0x34] sm:$0xf]
    %v1643 = vld [vmem:[#allocation10 + $0x38] sm:$0xf]
    %v1644 = vld [vmem:[#allocation10 + $0x3c] sm:$0xf]
    %v1645 = vld [vmem:[#allocation10 + $0x40] sm:$0xf]
    %v1646 = vld [vmem:[#allocation10 + $0x44] sm:$0xf]
    %v1647 = vld [vmem:[#allocation10 + $0x48] sm:$0xf]
    %v1648 = vld [vmem:[#allocation10 + $0x4c] sm:$0xf]
    %v1649 = vld [vmem:[#allocation10 + $0x50] sm:$0xf]
    %v1650 = vld [vmem:[#allocation10 + $0x54] sm:$0xf]
    %v1651 = vld [vmem:[#allocation10 + $0x58] sm:$0xf]
    %v1652 = vld [vmem:[#allocation10 + $0x5c] sm:$0xf]
    %v1653 = vld [vmem:[#allocation10 + $0x60] sm:$0xf]
    %v1654 = vld [vmem:[#allocation10 + $0x64] sm:$0xf]
    %v1655 = vld [vmem:[#allocation10 + $0x68] sm:$0xf]
    %v1656 = vld [vmem:[#allocation10 + $0x6c] sm:$0xf]
    %v1657 = vld [vmem:[#allocation10 + $0x70] sm:$0xf]
    %v1658 = vld [vmem:[#allocation10 + $0x74] sm:$0xf]
    %v1659 = vld [vmem:[#allocation10 + $0x78] sm:$0xf]
    %v1660 = vld [vmem:[#allocation10 + $0x7c] sm:$0xf]
    %v1661 = vld [vmem:[%s7] sm:$0x1]
    %v1663 = vlaneseq
    %v1664 = vshrl.u32 %v1663, 7
    %v1665 = vsub.s32 0, %v1664
    %v1666 = vrot.slane %v1661, %v1665
    %v1700 = vunpack.c.l.b16 %v1629
    %v1701 = vunpack.c.l.b16 %v1630
    %v1702 = vunpack.c.l.b16 %v1631
    %v1703 = vunpack.c.l.b16 %v1632
    %v1704 = vunpack.c.l.b16 %v1633
    %v1705 = vunpack.c.l.b16 %v1634
    %v1706 = vunpack.c.l.b16 %v1635
    %v1707 = vunpack.c.l.b16 %v1636
    %v1708 = vunpack.c.l.b16 %v1637
    %v1709 = vunpack.c.l.b16 %v1638
    %v1710 = vunpack.c.l.b16 %v1639
    %v1711 = vunpack.c.l.b16 %v1640
    %v1712 = vunpack.c.l.b16 %v1641
    %v1713 = vunpack.c.l.b16 %v1642
    %v1714 = vunpack.c.l.b16 %v1643
    %v1715 = vunpack.c.l.b16 %v1644
    %v1716 = vunpack.c.l.b16 %v1645
    %v1717 = vunpack.c.l.b16 %v1646
    %v1718 = vunpack.c.l.b16 %v1647
    %v1719 = vunpack.c.l.b16 %v1648
    %v1720 = vunpack.c.l.b16 %v1649
    %v1721 = vunpack.c.l.b16 %v1650
    %v1722 = vunpack.c.l.b16 %v1651
    %v1723 = vunpack.c.l.b16 %v1652
    %v1724 = vunpack.c.l.b16 %v1653
    %v1725 = vunpack.c.l.b16 %v1654
    %v1726 = vunpack.c.l.b16 %v1655
    %v1727 = vunpack.c.l.b16 %v1656
    %v1728 = vunpack.c.l.b16 %v1657
    %v1729 = vunpack.c.l.b16 %v1658
    %v1730 = vunpack.c.l.b16 %v1659
    %v1731 = vunpack.c.l.b16 %v1660
    %v1732 = vpack.c.b16 %v1701, %v1700
    %v1733 = vpack.c.b16 %v1703, %v1702
    %v1734 = vpack.c.b16 %v1705, %v1704
    %v1735 = vpack.c.b16 %v1707, %v1706
    %v1736 = vpack.c.b16 %v1709, %v1708
    %v1737 = vpack.c.b16 %v1711, %v1710
    %v1738 = vpack.c.b16 %v1713, %v1712
    %v1739 = vpack.c.b16 %v1715, %v1714
    %v1740 = vpack.c.b16 %v1717, %v1716
    %v1741 = vpack.c.b16 %v1719, %v1718
    %v1742 = vpack.c.b16 %v1721, %v1720
    %v1743 = vpack.c.b16 %v1723, %v1722
    %v1744 = vpack.c.b16 %v1725, %v1724
    %v1745 = vpack.c.b16 %v1727, %v1726
    %v1746 = vpack.c.b16 %v1729, %v1728
    %v1747 = vpack.c.b16 %v1731, %v1730
    %1764 = vmatprep.subr.bf16.mxu0 0
    %1765 = vmatpush1.bf16.msra.mxu0 %v1739
    %1766 = vmatprep.subr.bf16.mxu0 0
    %1767 = vmatpush1.bf16.msra.mxu0 %v1738
    %1768 = vmatprep.subr.bf16.mxu0 0
    %1769 = vmatpush1.bf16.msra.mxu0 %v1737
    %1770 = vmatprep.subr.bf16.mxu0 0
    %1771 = vmatpush1.bf16.msra.mxu0 %v1736
    %1772 = vmatprep.subr.bf16.mxu0 0
    %1773 = vmatpush1.bf16.msra.mxu0 %v1735
    %1774 = vmatprep.subr.bf16.mxu0 0
    %1775 = vmatpush1.bf16.msra.mxu0 %v1734
    %1776 = vmatprep.subr.bf16.mxu0 0
    %1777 = vmatpush1.bf16.msra.mxu0 %v1733
    %1778 = vmatprep.subr.bf16.mxu0 0
    %1779 = vmatpush1.bf16.msra.mxu0 %v1732
    %1780 = vmatprep.subr.bf16.mxu0 0
    %1781 = vmatpush2.bf16.msra.mxu0 %v1747
    %1782 = vmatprep.subr.bf16.mxu0 0
    %1783 = vmatpush2.bf16.msra.mxu0 %v1746
    %1784 = vmatprep.subr.bf16.mxu0 0
    %1785 = vmatpush2.bf16.msra.mxu0 %v1745
    %1786 = vmatprep.subr.bf16.mxu0 0
    %1787 = vmatpush2.bf16.msra.mxu0 %v1744
    %1788 = vmatprep.subr.bf16.mxu0 0
    %1789 = vmatpush2.bf16.msra.mxu0 %v1743
    %1790 = vmatprep.subr.bf16.mxu0 0
    %1791 = vmatpush2.bf16.msra.mxu0 %v1742
    %1792 = vmatprep.subr.bf16.mxu0 0
    %1793 = vmatpush2.bf16.msra.mxu0 %v1741
    %1794 = vmatprep.subr.bf16.mxu0 0
    %1795 = vmatpush2.bf16.msra.mxu0 %v1740
    %1796 = vmatprep.mubr.bf16.mxu0 %v1628
    %1797 = vmatmul.mubr.bf16.gmra.mxu0 %v1627
    %v1798 = vpop.f32.mrf.mxu0
    %v1799 = vadd.f32 %v1666, %v1798
    %v1800 = vpop.f32.mrf.mxu0
    %v1801 = vpop.f32.mrf.mxu0
    %v1802 = vpop.f32.mrf.mxu0
    %1803 = vdwg.mxu0
    %1804 = vst [vmem:[#allocation11] sm:$0xff] %v1799
    // Predicated region
    $region54: #{tpu_custom_call.1} parent=1 // pred_check
      _
    $region55: #{tpu_custom_call.1} parent=1 // pred_check_branch
      %1806 = sbr.rel (0) target = $region57
    $region56: #{tpu_custom_call.1} parent=1 // pred_region
      %s1808 = ssub.s32 128, 128
      %1809 = vsyncadd [#allocation4], %s1808
      %s1811 = sshll.u32 [#allocation11], 4
      %s1812 = int_to_ptr.vmem [resolvable:$true] %s1811
      %1814 = dma.vmem_to_hbm [thread:$0]  %s1812, 128, %s8, [#allocation4]
    $region57: #{tpu_custom_call.1} parent=1 // pred_fallthru
      _
    // Predicated region
    $region58: #{tpu_custom_call.1} parent=1 // pred_check
      _
    $region59: #{tpu_custom_call.1} parent=1 // pred_check_branch
      %1816 = sbr.rel (0) target = $region61
    $region60: #{tpu_custom_call.1} parent=1 // pred_region
      %1817 = dma.done [#allocation4], 128
    $region61: #{tpu_custom_call.1} parent=1 // pred_fallthru
      _
    %1818 = vsyncpa [#allocation3], 1
    %1819 = vsyncpa [#allocation6], 1
    %1820 = vsyncpa [#allocation9], 1
    %1821 = vsyncpa [#allocation4], 1

</llo_original>
